<compile_context>
chip_gen: v5e
topology: v5e:2x2
jax: 0.10.0
libtpu: 0.0.40
codegen_flags: <defaults>
</compile_context>

<pallas_src>
import functools

import jax
import jax.numpy as jnp
import numpy as np
from jax.experimental import pallas as pl
from jax.experimental.pallas import tpu as pltpu

EPS = 1e-5


def _conv_body(x_val, w_ref, y_ref, s_ref, lhs_ref, pad_ref, *, H, W, C_in, C_out):
    """3x3 'same' conv of one image via a single im2col matmul + BN partial stats."""
    HW = H * W

    # Zero only the 1-pixel halo border of the persistent padded scratch; the
    # interior is fully overwritten every grid step.
    pad_ref[0:1, :, :] = jnp.zeros((1, W + 2, C_in), jnp.float32)
    pad_ref[H + 1:H + 2, :, :] = jnp.zeros((1, W + 2, C_in), jnp.float32)
    pad_ref[:, 0:1, :] = jnp.zeros((H + 2, 1, C_in), jnp.float32)
    pad_ref[:, W + 1:W + 2, :] = jnp.zeros((H + 2, 1, C_in), jnp.float32)
    pad_ref[1:H + 1, 1:W + 1, :] = x_val

    # im2col: pack the 9 shifted taps into an (HW, 9*C_in) bf16 LHS so the MXU
    # runs one matmul with K = 9*C_in instead of 9 skinny K = C_in matmuls.
    t = 0
    for dy in range(3):
        for dx in range(3):
            tap = pad_ref[dy:dy + H, dx:dx + W, :].reshape(HW, C_in)
            lhs_ref[:, t * C_in:(t + 1) * C_in] = tap.astype(jnp.bfloat16)
            t += 1

    # bf16 operands, f32 accumulation: native single-pass MXU path.
    v = jnp.dot(lhs_ref[...], w_ref[...], preferred_element_type=jnp.float32)

    # Streaming BatchNorm statistics for this image: [sum, sum of squares].
    s_ref[0, 0:1, :] = jnp.sum(v, axis=0, keepdims=True)
    s_ref[0, 1:2, :] = jnp.sum(v * v, axis=0, keepdims=True)

    y_ref[0] = v.reshape(H, W, C_out)


def _conv_stats_kernel(x_ref, w_ref, y_ref, s_ref, lhs_ref, pad_ref,
                       *, H, W, C_in, C_out):
    _conv_body(x_ref[0], w_ref, y_ref, s_ref, lhs_ref, pad_ref,
               H=H, W=W, C_in=C_in, C_out=C_out)


def _bnrelu_conv_stats_kernel(x_ref, scale_ref, shift_ref, w_ref, y_ref, s_ref,
                              lhs_ref, pad_ref, *, H, W, C_in, C_out):
    # Fused BN1-apply (single FMA with precomputed scale/shift) + ReLU, feeding conv2.
    a = jnp.maximum(x_ref[0] * scale_ref[...] + shift_ref[...], 0.0)
    _conv_body(a, w_ref, y_ref, s_ref, lhs_ref, pad_ref,
               H=H, W=W, C_in=C_in, C_out=C_out)


def _bnrelu_kernel(x_ref, scale_ref, shift_ref, o_ref):
    o_ref[0] = jnp.maximum(x_ref[0] * scale_ref[...] + shift_ref[...], 0.0)


def _finalize_bn(stats, gamma, beta, count):
    """Fold batch sum / sum-of-squares into per-channel scale & shift (train-mode BN)."""
    s = jnp.sum(stats, axis=0)                       # (2, C)
    mean = s[0] / count
    var = s[1] / count - mean * mean                 # biased variance
    scale = gamma.reshape(-1) * jax.lax.rsqrt(var + EPS)
    shift = beta.reshape(-1) - mean * scale
    return scale.reshape(1, -1), shift.reshape(1, -1)


def double_conv(x_nchw, params):
    """x_nchw: (N, C_in, H, W) float32. Returns (N, C_out, H, W) float32."""
    N, C_in, H, W = x_nchw.shape
    C_out = params["w1"].shape[-1]

    x_nhwc = jnp.transpose(x_nchw, (0, 2, 3, 1)).astype(jnp.float32)

    # Weights reshaped for im2col (K = 9*C) and cast to bf16 in the wrapper.
    # Conv biases b1/b2 are intentionally NOT passed: training-mode BN cancels them.
    w1f = params["w1"].reshape(9 * C_in, C_out).astype(jnp.bfloat16)
    w2f = params["w2"].reshape(9 * C_out, C_out).astype(jnp.bfloat16)

    cparams = pltpu.CompilerParams(dimension_semantics=("parallel",))

    def img_spec(C):
        return pl.BlockSpec((1, H, W, C), lambda n: (n, 0, 0, 0))

    def full_spec(shape):
        return pl.BlockSpec(shape, lambda n: (0,) * len(shape))

    stats_spec = pl.BlockSpec((1, 2, C_out), lambda n: (n, 0, 0))
    stats_shape = jax.ShapeDtypeStruct((N, 2, C_out), jnp.float32)
    act_shape = jax.ShapeDtypeStruct((N, H, W, C_out), jnp.float32)

    def conv_scratch(cin):
        return [pltpu.VMEM((H * W, 9 * cin), jnp.bfloat16),     # im2col LHS
                pltpu.VMEM((H + 2, W + 2, cin), jnp.float32)]   # halo-padded image

    # ---- stage 1: conv1 + streaming BN1 statistics --------------------------
    y1, s1 = pl.pallas_call(
        functools.partial(_conv_stats_kernel, H=H, W=W, C_in=C_in, C_out=C_out),
        grid=(N,),
        in_specs=[img_spec(C_in), full_spec((9 * C_in, C_out))],
        out_specs=(img_spec(C_out), stats_spec),
        out_shape=(act_shape, stats_shape),
        scratch_shapes=conv_scratch(C_in),
        compiler_params=cparams,
    )(x_nhwc, w1f)

    scale1, shift1 = _finalize_bn(s1, params["g1"], params["be1"], N * H * W)

    # ---- stage 2: BN1+ReLU fused into conv2 + streaming BN2 statistics ------
    y2, s2 = pl.pallas_call(
        functools.partial(_bnrelu_conv_stats_kernel, H=H, W=W, C_in=C_out, C_out=C_out),
        grid=(N,),
        in_specs=[img_spec(C_out), full_spec((1, C_out)), full_spec((1, C_out)),
                  full_spec((9 * C_out, C_out))],
        out_specs=(img_spec(C_out), stats_spec),
        out_shape=(act_shape, stats_shape),
        scratch_shapes=conv_scratch(C_out),
        compiler_params=cparams,
    )(y1, scale1, shift1, w2f)

    scale2, shift2 = _finalize_bn(s2, params["g2"], params["be2"], N * H * W)

    # ---- stage 3: BN2 + ReLU -------------------------------------------------
    out_nhwc = pl.pallas_call(
        _bnrelu_kernel,
        grid=(N,),
        in_specs=[img_spec(C_out), full_spec((1, C_out)), full_spec((1, C_out))],
        out_specs=img_spec(C_out),
        out_shape=act_shape,
        compiler_params=cparams,
    )(y2, scale2, shift2)

    # TODO(synk): for production H/W/C sizes, tile the grid over (N, H//th) with a
    # halo BlockSpec sized per-generation VMEM (v7x: 64 MiB) and pack channels
    # lane-dense (last dim a multiple of 128 lanes) for unmasked stores.
    return jnp.transpose(out_nhwc, (0, 3, 1, 2))   # back to NCHW


def reference(x_nchw, params):
    """Pure-JAX reference reproducing the PyTorch forward (train-mode BN, with bias)."""
    def conv_bn_relu(x, w_hwio, b, g, be):
        w_oihw = jnp.transpose(w_hwio, (3, 2, 0, 1))
        y = jax.lax.conv_general_dilated(
            x, w_oihw, window_strides=(1, 1), padding=((1, 1), (1, 1)),
            dimension_numbers=("NCHW", "OIHW", "NCHW"),
            precision=jax.lax.Precision.HIGHEST)
        y = y + b.reshape(1, -1, 1, 1)
        mean = jnp.mean(y, axis=(0, 2, 3), keepdims=True)
        var = jnp.mean((y - mean) ** 2, axis=(0, 2, 3), keepdims=True)
        y = (y - mean) * jax.lax.rsqrt(var + EPS)
        y = y * g.reshape(1, -1, 1, 1) + be.reshape(1, -1, 1, 1)
        return jnp.maximum(y, 0.0)

    x = conv_bn_relu(x_nchw, params["w1"], params["b1"][0],
                     params["g1"][0], params["be1"][0])
    x = conv_bn_relu(x, params["w2"], params["b2"][0],
                     params["g2"][0], params["be2"][0])
    return x


def make_params(key, c_in, c_out):
    ks = jax.random.split(key, 8)
    # weights stored HWIO (3, 3, cin, cout); per-channel params stored (1, cout)
    return {
        "w1": 0.2 * jax.random.normal(ks[0], (3, 3, c_in, c_out), jnp.float32),
        "b1": 0.1 * jax.random.normal(ks[1], (1, c_out), jnp.float32),
        "g1": 1.0 + 0.1 * jax.random.normal(ks[2], (1, c_out), jnp.float32),
        "be1": 0.1 * jax.random.normal(ks[3], (1, c_out), jnp.float32),
        "w2": 0.2 * jax.random.normal(ks[4], (3, 3, c_out, c_out), jnp.float32),
        "b2": 0.1 * jax.random.normal(ks[5], (1, c_out), jnp.float32),
        "g2": 1.0 + 0.1 * jax.random.normal(ks[6], (1, c_out), jnp.float32),
        "be2": 0.1 * jax.random.normal(ks[7], (1, c_out), jnp.float32),
    }
    # TODO(synk): BatchNorm running_mean/running_var buffer updates (a training
    # side effect) are not reproduced; they do not affect the forward output.


if __name__ == "__main__":
    N, C_IN, C_OUT, H, W = 2, 4, 8, 16, 16

    key = jax.random.PRNGKey(0)
    kx, kp = jax.random.split(key)
    x = jax.random.normal(kx, (N, C_IN, H, W), jnp.float32)
    params = make_params(kp, C_IN, C_OUT)

    out = jax.block_until_ready(double_conv(x, params))
    ref = jax.block_until_ready(reference(x, params))

    assert out.shape == (N, C_OUT, H, W), out.shape
    # bf16 MXU operands => slightly looser tolerance than pure-f32.
    np.testing.assert_allclose(np.asarray(out), np.asarray(ref),
                               rtol=2e-2, atol=2e-2)
    print("KERNEL_OK")
</pallas_src>

<mosaic_0001>
module attributes {stable_mosaic.version = 11 : i64} {
  func.func @_conv_stats_kernel(%arg0: i32, %arg1: memref<1x16x16x4xf32, #tpu.memory_space<vmem>>, %arg2: memref<36x8xbf16, #tpu.memory_space<vmem>>, %arg3: memref<1x16x16x8xf32, #tpu.memory_space<vmem>>, %arg4: memref<1x2x8xf32, #tpu.memory_space<vmem>>, %arg5: memref<256x36xbf16, #tpu.memory_space<vmem>>, %arg6: memref<18x18x4xf32, #tpu.memory_space<vmem>>) attributes {dimension_semantics = [#tpu.dimension_semantics<parallel>], iteration_bounds = array<i64: 2>, scalar_prefetch = 0 : i64, scratch_operands = 2 : i64, tpu.core_type = #tpu.core_type<tc>, window_params = [{transform_indices = @transform_0, window_bounds = array<i64: 1, 16, 16, 4>}, {pipeline_mode = #tpu.pipeline_mode<synchronous>, transform_indices = @transform_1, window_bounds = array<i64: 36, 8>}, {transform_indices = @transform_2, window_bounds = array<i64: 1, 16, 16, 8>}, {transform_indices = @transform_3, window_bounds = array<i64: 1, 2, 8>}]} {
    %c0 = arith.constant 0 : index
    %c0_0 = arith.constant 0 : index
    %c0_1 = arith.constant 0 : index
    %c0_2 = arith.constant 0 : index
    %0 = vector.load %arg1[%c0, %c0_0, %c0_1, %c0_2] : memref<1x16x16x4xf32, #tpu.memory_space<vmem>>, vector<1x16x16x4xf32>
    %1 = vector.shape_cast %0 : vector<1x16x16x4xf32> to vector<16x16x4xf32>
    %cst = arith.constant 0.000000e+00 : f32
    %2 = vector.broadcast %cst : f32 to vector<1x18x4xf32>
    %c0_3 = arith.constant 0 : index
    %c0_4 = arith.constant 0 : index
    %c0_5 = arith.constant 0 : index
    %3 = vector.load %arg6[%c0_3, %c0_4, %c0_5] : memref<18x18x4xf32, #tpu.memory_space<vmem>>, vector<1x18x4xf32>
    tpu.vector_store %arg6[%c0_3, %c0_4, %c0_5], %2 {strides = array<i32>} : memref<18x18x4xf32, #tpu.memory_space<vmem>>, vector<1x18x4xf32>,
    %cst_6 = arith.constant 0.000000e+00 : f32
    %4 = vector.broadcast %cst_6 : f32 to vector<1x18x4xf32>
    %c17 = arith.constant 17 : index
    %c0_7 = arith.constant 0 : index
    %c0_8 = arith.constant 0 : index
    %5 = vector.load %arg6[%c17, %c0_7, %c0_8] : memref<18x18x4xf32, #tpu.memory_space<vmem>>, vector<1x18x4xf32>
    tpu.vector_store %arg6[%c17, %c0_7, %c0_8], %4 {strides = array<i32>} : memref<18x18x4xf32, #tpu.memory_space<vmem>>, vector<1x18x4xf32>,
    %cst_9 = arith.constant 0.000000e+00 : f32
    %6 = vector.broadcast %cst_9 : f32 to vector<18x1x4xf32>
    %c0_10 = arith.constant 0 : index
    %c0_11 = arith.constant 0 : index
    %c0_12 = arith.constant 0 : index
    %7 = vector.load %arg6[%c0_10, %c0_11, %c0_12] : memref<18x18x4xf32, #tpu.memory_space<vmem>>, vector<18x1x4xf32>
    tpu.vector_store %arg6[%c0_10, %c0_11, %c0_12], %6 {strides = array<i32>} : memref<18x18x4xf32, #tpu.memory_space<vmem>>, vector<18x1x4xf32>,
    %cst_13 = arith.constant 0.000000e+00 : f32
    %8 = vector.broadcast %cst_13 : f32 to vector<18x1x4xf32>
    %c0_14 = arith.constant 0 : index
    %c17_15 = arith.constant 17 : index
    %c0_16 = arith.constant 0 : index
    %9 = vector.load %arg6[%c0_14, %c17_15, %c0_16] : memref<18x18x4xf32, #tpu.memory_space<vmem>>, vector<18x1x4xf32>
    tpu.vector_store %arg6[%c0_14, %c17_15, %c0_16], %8 {strides = array<i32>} : memref<18x18x4xf32, #tpu.memory_space<vmem>>, vector<18x1x4xf32>,
    %c1 = arith.constant 1 : index
    %c1_17 = arith.constant 1 : index
    %c0_18 = arith.constant 0 : index
    %10 = vector.load %arg6[%c1, %c1_17, %c0_18] : memref<18x18x4xf32, #tpu.memory_space<vmem>>, vector<16x16x4xf32>
    tpu.vector_store %arg6[%c1, %c1_17, %c0_18], %1 {strides = array<i32>} : memref<18x18x4xf32, #tpu.memory_space<vmem>>, vector<16x16x4xf32>,
    %c0_19 = arith.constant 0 : index
    %c0_20 = arith.constant 0 : index
    %c0_21 = arith.constant 0 : index
    %11 = vector.load %arg6[%c0_19, %c0_20, %c0_21] : memref<18x18x4xf32, #tpu.memory_space<vmem>>, vector<16x16x4xf32>
    %12 = vector.shape_cast %11 : vector<16x16x4xf32> to vector<256x4xf32>
    %13 = arith.truncf %12 : vector<256x4xf32> to vector<256x4xbf16>
    %c0_22 = arith.constant 0 : index
    %c0_23 = arith.constant 0 : index
    %14 = vector.load %arg5[%c0_22, %c0_23] : memref<256x36xbf16, #tpu.memory_space<vmem>>, vector<256x4xbf16>
    tpu.vector_store %arg5[%c0_22, %c0_23], %13 {strides = array<i32>} : memref<256x36xbf16, #tpu.memory_space<vmem>>, vector<256x4xbf16>,
    %c0_24 = arith.constant 0 : index
    %c1_25 = arith.constant 1 : index
    %c0_26 = arith.constant 0 : index
    %15 = vector.load %arg6[%c0_24, %c1_25, %c0_26] : memref<18x18x4xf32, #tpu.memory_space<vmem>>, vector<16x16x4xf32>
    %16 = vector.shape_cast %15 : vector<16x16x4xf32> to vector<256x4xf32>
    %17 = arith.truncf %16 : vector<256x4xf32> to vector<256x4xbf16>
    %c0_27 = arith.constant 0 : index
    %c4 = arith.constant 4 : index
    %18 = vector.load %arg5[%c0_27, %c4] : memref<256x36xbf16, #tpu.memory_space<vmem>>, vector<256x4xbf16>
    tpu.vector_store %arg5[%c0_27, %c4], %17 {strides = array<i32>} : memref<256x36xbf16, #tpu.memory_space<vmem>>, vector<256x4xbf16>,
    %c0_28 = arith.constant 0 : index
    %c2 = arith.constant 2 : index
    %c0_29 = arith.constant 0 : index
    %19 = vector.load %arg6[%c0_28, %c2, %c0_29] : memref<18x18x4xf32, #tpu.memory_space<vmem>>, vector<16x16x4xf32>
    %20 = vector.shape_cast %19 : vector<16x16x4xf32> to vector<256x4xf32>
    %21 = arith.truncf %20 : vector<256x4xf32> to vector<256x4xbf16>
    %c0_30 = arith.constant 0 : index
    %c8 = arith.constant 8 : index
    %22 = vector.load %arg5[%c0_30, %c8] : memref<256x36xbf16, #tpu.memory_space<vmem>>, vector<256x4xbf16>
    tpu.vector_store %arg5[%c0_30, %c8], %21 {strides = array<i32>} : memref<256x36xbf16, #tpu.memory_space<vmem>>, vector<256x4xbf16>,
    %c1_31 = arith.constant 1 : index
    %c0_32 = arith.constant 0 : index
    %c0_33 = arith.constant 0 : index
    %23 = vector.load %arg6[%c1_31, %c0_32, %c0_33] : memref<18x18x4xf32, #tpu.memory_space<vmem>>, vector<16x16x4xf32>
    %24 = vector.shape_cast %23 : vector<16x16x4xf32> to vector<256x4xf32>
    %25 = arith.truncf %24 : vector<256x4xf32> to vector<256x4xbf16>
    %c0_34 = arith.constant 0 : index
    %c12 = arith.constant 12 : index
    %26 = vector.load %arg5[%c0_34, %c12] : memref<256x36xbf16, #tpu.memory_space<vmem>>, vector<256x4xbf16>
    tpu.vector_store %arg5[%c0_34, %c12], %25 {strides = array<i32>} : memref<256x36xbf16, #tpu.memory_space<vmem>>, vector<256x4xbf16>,
    %c1_35 = arith.constant 1 : index
    %c1_36 = arith.constant 1 : index
    %c0_37 = arith.constant 0 : index
    %27 = vector.load %arg6[%c1_35, %c1_36, %c0_37] : memref<18x18x4xf32, #tpu.memory_space<vmem>>, vector<16x16x4xf32>
    %28 = vector.shape_cast %27 : vector<16x16x4xf32> to vector<256x4xf32>
    %29 = arith.truncf %28 : vector<256x4xf32> to vector<256x4xbf16>
    %c0_38 = arith.constant 0 : index
    %c16 = arith.constant 16 : index
    %30 = vector.load %arg5[%c0_38, %c16] : memref<256x36xbf16, #tpu.memory_space<vmem>>, vector<256x4xbf16>
    tpu.vector_store %arg5[%c0_38, %c16], %29 {strides = array<i32>} : memref<256x36xbf16, #tpu.memory_space<vmem>>, vector<256x4xbf16>,
    %c1_39 = arith.constant 1 : index
    %c2_40 = arith.constant 2 : index
    %c0_41 = arith.constant 0 : index
    %31 = vector.load %arg6[%c1_39, %c2_40, %c0_41] : memref<18x18x4xf32, #tpu.memory_space<vmem>>, vector<16x16x4xf32>
    %32 = vector.shape_cast %31 : vector<16x16x4xf32> to vector<256x4xf32>
    %33 = arith.truncf %32 : vector<256x4xf32> to vector<256x4xbf16>
    %c0_42 = arith.constant 0 : index
    %c20 = arith.constant 20 : index
    %34 = vector.load %arg5[%c0_42, %c20] : memref<256x36xbf16, #tpu.memory_space<vmem>>, vector<256x4xbf16>
    tpu.vector_store %arg5[%c0_42, %c20], %33 {strides = array<i32>} : memref<256x36xbf16, #tpu.memory_space<vmem>>, vector<256x4xbf16>,
    %c2_43 = arith.constant 2 : index
    %c0_44 = arith.constant 0 : index
    %c0_45 = arith.constant 0 : index
    %35 = vector.load %arg6[%c2_43, %c0_44, %c0_45] : memref<18x18x4xf32, #tpu.memory_space<vmem>>, vector<16x16x4xf32>
    %36 = vector.shape_cast %35 : vector<16x16x4xf32> to vector<256x4xf32>
    %37 = arith.truncf %36 : vector<256x4xf32> to vector<256x4xbf16>
    %c0_46 = arith.constant 0 : index
    %c24 = arith.constant 24 : index
    %38 = vector.load %arg5[%c0_46, %c24] : memref<256x36xbf16, #tpu.memory_space<vmem>>, vector<256x4xbf16>
    tpu.vector_store %arg5[%c0_46, %c24], %37 {strides = array<i32>} : memref<256x36xbf16, #tpu.memory_space<vmem>>, vector<256x4xbf16>,
    %c2_47 = arith.constant 2 : index
    %c1_48 = arith.constant 1 : index
    %c0_49 = arith.constant 0 : index
    %39 = vector.load %arg6[%c2_47, %c1_48, %c0_49] : memref<18x18x4xf32, #tpu.memory_space<vmem>>, vector<16x16x4xf32>
    %40 = vector.shape_cast %39 : vector<16x16x4xf32> to vector<256x4xf32>
    %41 = arith.truncf %40 : vector<256x4xf32> to vector<256x4xbf16>
    %c0_50 = arith.constant 0 : index
    %c28 = arith.constant 28 : index
    %42 = vector.load %arg5[%c0_50, %c28] : memref<256x36xbf16, #tpu.memory_space<vmem>>, vector<256x4xbf16>
    tpu.vector_store %arg5[%c0_50, %c28], %41 {strides = array<i32>} : memref<256x36xbf16, #tpu.memory_space<vmem>>, vector<256x4xbf16>,
    %c2_51 = arith.constant 2 : index
    %c2_52 = arith.constant 2 : index
    %c0_53 = arith.constant 0 : index
    %43 = vector.load %arg6[%c2_51, %c2_52, %c0_53] : memref<18x18x4xf32, #tpu.memory_space<vmem>>, vector<16x16x4xf32>
    %44 = vector.shape_cast %43 : vector<16x16x4xf32> to vector<256x4xf32>
    %45 = arith.truncf %44 : vector<256x4xf32> to vector<256x4xbf16>
    %c0_54 = arith.constant 0 : index
    %c32 = arith.constant 32 : index
    %46 = vector.load %arg5[%c0_54, %c32] : memref<256x36xbf16, #tpu.memory_space<vmem>>, vector<256x4xbf16>
    tpu.vector_store %arg5[%c0_54, %c32], %45 {strides = array<i32>} : memref<256x36xbf16, #tpu.memory_space<vmem>>, vector<256x4xbf16>,
    %c0_55 = arith.constant 0 : index
    %c0_56 = arith.constant 0 : index
    %47 = vector.load %arg5[%c0_55, %c0_56] : memref<256x36xbf16, #tpu.memory_space<vmem>>, vector<256x36xbf16>
    %c0_57 = arith.constant 0 : index
    %c0_58 = arith.constant 0 : index
    %48 = vector.load %arg2[%c0_57, %c0_58] : memref<36x8xbf16, #tpu.memory_space<vmem>>, vector<36x8xbf16>
    %cst_59 = arith.constant dense<0.000000e+00> : vector<256x8xf32>
    %49 = tpu.matmul %47, %48, %cst_59 {dimension_numbers = #tpu.dot_dimension_numbers<[1], [0], [0], [1], [0, 0, 1, 1], [], []>} : vector<256x36xbf16>, vector<36x8xbf16>, vector<256x8xf32> -> vector<256x8xf32>
    %cst_60 = arith.constant dense<0.000000e+00> : vector<8xf32>
    %50 = vector.multi_reduction <add>, %49, %cst_60 [0] : vector<256x8xf32> to vector<8xf32>
    %51 = vector.shape_cast %50 : vector<8xf32> to vector<1x8xf32>
    %c0_61 = arith.constant 0 : index
    %c0_62 = arith.constant 0 : index
    %c0_63 = arith.constant 0 : index
    %52 = vector.load %arg4[%c0_61, %c0_62, %c0_63] : memref<1x2x8xf32, #tpu.memory_space<vmem>>, vector<1x1x8xf32>
    %53 = vector.shape_cast %52 : vector<1x1x8xf32> to vector<1x8xf32>
    %54 = vector.shape_cast %51 : vector<1x8xf32> to vector<1x1x8xf32>
    tpu.vector_store %arg4[%c0_61, %c0_62, %c0_63], %54 {strides = array<i32>} : memref<1x2x8xf32, #tpu.memory_space<vmem>>, vector<1x1x8xf32>,
    %55 = arith.mulf %49, %49 : vector<256x8xf32>
    %cst_64 = arith.constant dense<0.000000e+00> : vector<8xf32>
    %56 = vector.multi_reduction <add>, %55, %cst_64 [0] : vector<256x8xf32> to vector<8xf32>
    %57 = vector.shape_cast %56 : vector<8xf32> to vector<1x8xf32>
    %c0_65 = arith.constant 0 : index
    %c1_66 = arith.constant 1 : index
    %c0_67 = arith.constant 0 : index
    %58 = vector.load %arg4[%c0_65, %c1_66, %c0_67] : memref<1x2x8xf32, #tpu.memory_space<vmem>>, vector<1x1x8xf32>
    %59 = vector.shape_cast %58 : vector<1x1x8xf32> to vector<1x8xf32>
    %60 = vector.shape_cast %57 : vector<1x8xf32> to vector<1x1x8xf32>
    tpu.vector_store %arg4[%c0_65, %c1_66, %c0_67], %60 {strides = array<i32>} : memref<1x2x8xf32, #tpu.memory_space<vmem>>, vector<1x1x8xf32>,
    %61 = vector.shape_cast %49 : vector<256x8xf32> to vector<16x16x8xf32>
    %c0_68 = arith.constant 0 : index
    %c0_69 = arith.constant 0 : index
    %c0_70 = arith.constant 0 : index
    %c0_71 = arith.constant 0 : index
    %62 = vector.load %arg3[%c0_68, %c0_69, %c0_70, %c0_71] : memref<1x16x16x8xf32, #tpu.memory_space<vmem>>, vector<1x16x16x8xf32>
    %63 = vector.shape_cast %62 : vector<1x16x16x8xf32> to vector<16x16x8xf32>
    %64 = vector.shape_cast %61 : vector<16x16x8xf32> to vector<1x16x16x8xf32>
    tpu.vector_store %arg3[%c0_68, %c0_69, %c0_70, %c0_71], %64 {strides = array<i32>} : memref<1x16x16x8xf32, #tpu.memory_space<vmem>>, vector<1x16x16x8xf32>,
    return
  }
  func.func @transform_0(%arg0: i32) -> (i32, i32, i32, i32) {
    %c0_i32 = arith.constant 0 : i32
    %c0_i32_0 = arith.constant 0 : i32
    %c0_i32_1 = arith.constant 0 : i32
    %c0_i32_2 = arith.constant 0 : i32
    return %arg0, %c0_i32, %c0_i32_0, %c0_i32_1 : i32, i32, i32, i32
  }
  func.func @transform_1(%arg0: i32) -> (i32, i32) {
    %c0_i32 = arith.constant 0 : i32
    %c0_i32_0 = arith.constant 0 : i32
    %c0_i32_1 = arith.constant 0 : i32
    return %c0_i32, %c0_i32_0 : i32, i32
  }
  func.func @transform_2(%arg0: i32) -> (i32, i32, i32, i32) {
    %c0_i32 = arith.constant 0 : i32
    %c0_i32_0 = arith.constant 0 : i32
    %c0_i32_1 = arith.constant 0 : i32
    %c0_i32_2 = arith.constant 0 : i32
    return %arg0, %c0_i32, %c0_i32_0, %c0_i32_1 : i32, i32, i32, i32
  }
  func.func @transform_3(%arg0: i32) -> (i32, i32, i32) {
    %c0_i32 = arith.constant 0 : i32
    %c0_i32_0 = arith.constant 0 : i32
    %c0_i32_1 = arith.constant 0 : i32
    return %arg0, %c0_i32, %c0_i32_0 : i32, i32, i32
  }
}

</mosaic_0001>

<llo_original>
// kernel: tpu_custom_call.1
$region0: #{tpu_custom_call.1}
  #allocation0 [shape = 'u32[]', space=smem, size = 0x4, offset = 0x4, fixed_abs, tag = 'smem constant byte address 0x4 - core index']
  #allocation1 [shape = 'u32[72,128]{1,0:T(1,128)}', space=vmem, size = 0x9000, scoped, tag = 'internal scratch']
  #allocation2 [shape = 'bf16[256,36]{1,0:T(8,128)(2,1)}', space=vmem, size = 0x10000, scoped, tag = 'scratch operand']
  #allocation3 [shape = 'f32[18,18,4]{2,1,0:T(8,128)}', space=vmem, size = 0x36000, scoped, tag = 'scratch operand']
  %s0 = inlined_call_operand.vmem [shape: f32[2,16,16,4], index: 0, kind: input, shape index: {}]
  %s1 = inlined_call_operand.vmem [shape: bf16[36,8], index: 1, kind: input, shape index: {}]
  %s2 = inlined_call_operand.vmem [shape: f32[2,16,16,8], index: 2, kind: output, shape index: {0}]
  %s3 = inlined_call_operand.hbm [shape: f32[2,2,8], index: 3, kind: output, shape index: {1}]
  %4 = xla_tuple %s2, %s3
  %s5 = sld [smem:[#allocation0]]
  $region49: #{tpu_custom_call.1} parent=0
    _
  %s7 = ssub.s32 1, %s5
  %s8 = scalar_select 0, %s7, %s5
  $region1: #{tpu_custom_call.1} parent=0
    #allocation4 [shape = 'u8[2048]{0}', space=vmem, size = 0x800, scoped, tag = 'output window, operand 1']
    #allocation5 [shape = 's32[2]{0}', space=sflag, size = 0x8, scoped, tag = 'scoped memory for tpu_custom_call.1']
    %9 = vsyncpa [#allocation5], 0
    %s10 = scalar_lea.sflag [#allocation5], 1
    %11 = vsyncpa %s10, 0
    loop: start=0, step=1, limit=4
    $region2: #{tpu_custom_call.1} parent=1 // loop_pre_header
      _
    $region3: #{tpu_custom_call.1} parent=1 // loop_header
      %s13 = sphi 0, %s17
      %p14 = scmp.ge.s32.totalorder %s13, 4
      %s23 = sphi 0, %s25
      %s26 = sphi 0, %s23
      %s27 = sphi 0, %s26
      %s43 = sphi 0, %s27
      %s47 = sphi 0, %s47
      %s49 = sphi 0, %s47
      %s50 = sphi 0, %s49
      %s64 = sphi 0, %s50
      %s70 = sphi 0, %s72
      %s73 = sphi 0, %s70
      %s74 = sphi 0, %s73
      %s90 = sphi 0, %s74
      %s96 = sphi 0, %s98
      %s99 = sphi 0, %s96
      %s100 = sphi 0, %s99
      %s116 = sphi 0, %s100
    $region4: #{tpu_custom_call.1} parent=1 // loop_header_branch
      %16 = sbr.rel (%p14) target = $region8
    $region5: #{tpu_custom_call.1} parent=1 // loop_body
      %s18 = ssub.s32 %s13, 1
      %s19 = ssub.s32 %s13, 2
      %s20 = sadd.s32 %s13, 1
      %s21 = ssub.s32 %s13, %s20
      %p22 = scmp.eq.s32.totalorder %s21, 0
      %s24 = sadd.s32 %s23, 1
      %s25 = scalar_select %p22, %s23, %s24
      %p28 = pneg %p22
      %p29 = scmp.eq.s32.totalorder %s13, 1
      %p30 = por %p28, %p29
      %p31 = scmp.ne.s32.totalorder %s23, %s26
      %p32 = scmp.eq.s32.totalorder %s13, 0
      %p33 = por %p31, %p32
      %p34 = scmp.ne.s32.totalorder %s23, %s26
      %p35 = scmp.eq.s32.totalorder %s18, 1
      %p36 = por %p34, %p35
      %p37 = scmp.ne.s32.totalorder %s26, %s27
      %p38 = scmp.eq.s32.totalorder %s18, 0
      %p39 = por %p37, %p38
      %p40 = scmp.ne.s32.totalorder %s26, %s27
      %p41 = scmp.eq.s32.totalorder %s19, 1
      %p42 = por %p40, %p41
      %p44 = scmp.ne.s32.totalorder %s27, %s43
      %p45 = scmp.eq.s32.totalorder %s19, 0
      %p46 = por %p44, %p45
      %s48 = sadd.s32 %s47, 1
      %p51 = scmp.eq.s32.totalorder %s13, 1
      %p52 = scmp.ne.s32.totalorder %s47, %s49
      %p53 = scmp.eq.s32.totalorder %s13, 0
      %p54 = por %p52, %p53
      %p55 = scmp.ne.s32.totalorder %s47, %s49
      %p56 = scmp.eq.s32.totalorder %s18, 1
      %p57 = por %p55, %p56
      %p58 = scmp.ne.s32.totalorder %s49, %s50
      %p59 = scmp.eq.s32.totalorder %s18, 0
      %p60 = por %p58, %p59
      %p61 = scmp.ne.s32.totalorder %s49, %s50
      %p62 = scmp.eq.s32.totalorder %s19, 1
      %p63 = por %p61, %p62
      %p65 = scmp.ne.s32.totalorder %s50, %s64
      %p66 = scmp.eq.s32.totalorder %s19, 0
      %p67 = por %p65, %p66
      %s68 = ssub.s32 %s13, %s20
      %p69 = scmp.eq.s32.totalorder %s68, 0
      %s71 = sadd.s32 %s70, 1
      %s72 = scalar_select %p69, %s70, %s71
      %p75 = pneg %p69
      %p76 = scmp.eq.s32.totalorder %s13, 1
      %p77 = por %p75, %p76
      %p78 = scmp.ne.s32.totalorder %s70, %s73
      %p79 = scmp.eq.s32.totalorder %s13, 0
      %p80 = por %p78, %p79
      %p81 = scmp.ne.s32.totalorder %s70, %s73
      %p82 = scmp.eq.s32.totalorder %s18, 1
      %p83 = por %p81, %p82
      %p84 = scmp.ne.s32.totalorder %s73, %s74
      %p85 = scmp.eq.s32.totalorder %s18, 0
      %p86 = por %p84, %p85
      %p87 = scmp.ne.s32.totalorder %s73, %s74
      %p88 = scmp.eq.s32.totalorder %s19, 1
      %p89 = por %p87, %p88
      %p91 = scmp.ne.s32.totalorder %s74, %s90
      %p92 = scmp.eq.s32.totalorder %s19, 0
      %p93 = por %p91, %p92
      %s94 = ssub.s32 %s13, %s20
      %p95 = scmp.eq.s32.totalorder %s94, 0
      %s97 = sadd.s32 %s96, 1
      %s98 = scalar_select %p95, %s96, %s97
      %p101 = pneg %p95
      %p102 = scmp.eq.s32.totalorder %s13, 1
      %p103 = por %p101, %p102
      %p104 = scmp.ne.s32.totalorder %s96, %s99
      %p105 = scmp.eq.s32.totalorder %s13, 0
      %p106 = por %p104, %p105
      %p107 = scmp.ne.s32.totalorder %s96, %s99
      %p108 = scmp.eq.s32.totalorder %s18, 1
      %p109 = por %p107, %p108
      %p110 = scmp.ne.s32.totalorder %s99, %s100
      %p111 = scmp.eq.s32.totalorder %s18, 0
      %p112 = por %p110, %p111
      %p113 = scmp.ne.s32.totalorder %s99, %s100
      %p114 = scmp.eq.s32.totalorder %s19, 1
      %p115 = por %p113, %p114
      %p117 = scmp.ne.s32.totalorder %s100, %s116
      %p118 = scmp.eq.s32.totalorder %s19, 0
      %p119 = por %p117, %p118
      %p120 = scmp.le.s32.totalorder 1, %s13
      %p121 = scmp.lt.s32.totalorder %s13, 3
      %p122 = pnand %p120, %p121
      %p123 = pneg %p122
      // Predicated region
      $region9: #{tpu_custom_call.1} parent=5 // pred_check
        _
      $region10: #{tpu_custom_call.1} parent=5 // pred_check_branch
        %125 = sbr.rel (%p122) target = $region12
      $region11: #{tpu_custom_call.1} parent=5 // pred_region
        %s126 = ssub.s32 %s13, 1
        // Predicated region
        $region13: #{tpu_custom_call.1} parent=11 // pred_check
          %p127 = pneg %p60
        $region14: #{tpu_custom_call.1} parent=11 // pred_check_branch
          %129 = sbr.rel (%p127) target = $region16
        $region15: #{tpu_custom_call.1} parent=11 // pred_region
          _
        $region16: #{tpu_custom_call.1} parent=11 // pred_fallthru
          _
      $region12: #{tpu_custom_call.1} parent=5 // pred_fallthru
        _
      %p130 = scmp.lt.s32.totalorder %s13, 2
      // Predicated region
      $region17: #{tpu_custom_call.1} parent=5 // pred_check
        %p131 = pneg %p130
      $region18: #{tpu_custom_call.1} parent=5 // pred_check_branch
        %133 = sbr.rel (%p131) target = $region20
      $region19: #{tpu_custom_call.1} parent=5 // pred_region
        // Predicated region
        $region21: #{tpu_custom_call.1} parent=19 // pred_check
          %p134 = pneg %p33
        $region22: #{tpu_custom_call.1} parent=19 // pred_check_branch
          %136 = sbr.rel (%p134) target = $region24
        $region23: #{tpu_custom_call.1} parent=19 // pred_region
          %p137 = scmp.lt.s32.totalorder %s13, 1
          %s138 = scalar_select %p137, %s13, 1
          %s139 = smul.addr %s138, 32
          %s140 = smul.addr %s139, 8
          %s141 = scalar_lea.vmem %s0, %s140
        $region24: #{tpu_custom_call.1} parent=19 // pred_fallthru
          _
      $region20: #{tpu_custom_call.1} parent=5 // pred_fallthru
        _
      %p142 = scmp.le.s32.totalorder 1, %s13
      %p143 = scmp.lt.s32.totalorder %s13, 3
      %p144 = pnand %p142, %p143
      %p145 = pneg %p144
      // Predicated region
      $region25: #{tpu_custom_call.1} parent=5 // pred_check
        _
      $region26: #{tpu_custom_call.1} parent=5 // pred_check_branch
        %147 = sbr.rel (%p144) target = $region28
      $region27: #{tpu_custom_call.1} parent=5 // pred_region
        %s148 = ssub.s32 %s13, 1
        %p149 = scmp.lt.s32.totalorder %s18, 1
        %s150 = scalar_select %p149, %s18, 1
        %s151 = smul.addr %s150, 32
        %s152 = smul.addr %s151, 8
        %s153 = scalar_lea.vmem %s0, %s152
        %p154 = pneg %p39
        %p155 = pneg %p36
        %p156 = pneg %p60
        %p157 = pneg %p57
        %p158 = pneg %p86
        %p159 = pneg %p83
        %p160 = scmp.lt.s32.totalorder %s18, 1
        %s161 = scalar_select %p160, %s18, 1
        %s162 = smul.addr %s161, 32
        %s163 = smul.addr %s162, 8
        %s164 = scalar_lea.vmem %s2, %s163
        %p165 = pneg %p112
        %p166 = pneg %p109
        %s167 = sand.u32 %s99, 1
        %s168 = scalar_lea.sflag [#allocation5], %s167
        %s169 = sand.u32 %s99, 1
        %s170 = smul.addr %s169, 2
        %s171 = scalar_lea.vmem [#allocation4], %s170
        %p172 = scmp.lt.s32.totalorder %s18, 1
        %s173 = scalar_select %p172, %s18, 1
        %s174 = smul.addr %s173, 32
        %s175 = smul.addr %s174, 8
        %s176 = scalar_lea.vmem %s0, %s175
        %p177 = scmp.lt.s32.totalorder %s18, 1
        %s178 = scalar_select %p177, %s18, 1
        %s179 = smul.addr %s178, 32
        %s180 = smul.addr %s179, 8
        %s181 = scalar_lea.vmem %s2, %s180
        %v183 = vld [vmem:[%s176] sm:$0xff]
        %v184 = vld [vmem:[%s176 + $0x8] sm:$0xff]
        %v185 = vld [vmem:[%s176 + $0x10] sm:$0xff]
        %v186 = vld [vmem:[%s176 + $0x18] sm:$0xff]
        %v187 = vld [vmem:[%s176 + $0x20] sm:$0xff]
        %v188 = vld [vmem:[%s176 + $0x28] sm:$0xff]
        %v189 = vld [vmem:[%s176 + $0x30] sm:$0xff]
        %v190 = vld [vmem:[%s176 + $0x38] sm:$0xff]
        %v191 = vld [vmem:[%s176 + $0x40] sm:$0xff]
        %v192 = vld [vmem:[%s176 + $0x48] sm:$0xff]
        %v193 = vld [vmem:[%s176 + $0x50] sm:$0xff]
        %v194 = vld [vmem:[%s176 + $0x58] sm:$0xff]
        %v195 = vld [vmem:[%s176 + $0x60] sm:$0xff]
        %v196 = vld [vmem:[%s176 + $0x68] sm:$0xff]
        %v197 = vld [vmem:[%s176 + $0x70] sm:$0xff]
        %v198 = vld [vmem:[%s176 + $0x78] sm:$0xff]
        %v199 = vld [vmem:[%s176 + $0x80] sm:$0xff]
        %v200 = vld [vmem:[%s176 + $0x88] sm:$0xff]
        %v201 = vld [vmem:[%s176 + $0x90] sm:$0xff]
        %v202 = vld [vmem:[%s176 + $0x98] sm:$0xff]
        %v203 = vld [vmem:[%s176 + $0xa0] sm:$0xff]
        %v204 = vld [vmem:[%s176 + $0xa8] sm:$0xff]
        %v205 = vld [vmem:[%s176 + $0xb0] sm:$0xff]
        %v206 = vld [vmem:[%s176 + $0xb8] sm:$0xff]
        %v207 = vld [vmem:[%s176 + $0xc0] sm:$0xff]
        %v208 = vld [vmem:[%s176 + $0xc8] sm:$0xff]
        %v209 = vld [vmem:[%s176 + $0xd0] sm:$0xff]
        %v210 = vld [vmem:[%s176 + $0xd8] sm:$0xff]
        %v211 = vld [vmem:[%s176 + $0xe0] sm:$0xff]
        %v212 = vld [vmem:[%s176 + $0xe8] sm:$0xff]
        %v213 = vld [vmem:[%s176 + $0xf0] sm:$0xff]
        %v214 = vld [vmem:[%s176 + $0xf8] sm:$0xff]
        %vm215 = vcmask 31744
        %216 = vst.msk [vmem:[#allocation3] sm:$0xff] %vm215, 0.0
        %217 = vst.msk [vmem:[#allocation3 + $0x8] sm:$0xff] %vm215, 0.0
        %vm218 = vcmask 25600
        %219 = vst.msk [vmem:[#allocation3 + $0x10] sm:$0x3] %vm218, 0.0
        %s220 = scalar_lea.vmem [#allocation3], 408
        %221 = vst.msk [vmem:[%s220] sm:$0xff] %vm215, 0.0
        %222 = vst.msk [vmem:[%s220 + $0x8] sm:$0xff] %vm215, 0.0
        %223 = vst.msk [vmem:[%s220 + $0x10] sm:$0x3] %vm218, 0.0
        %vm224 = vcmask 24576
        %225 = vst.msk [vmem:[#allocation3] sm:$0x1] %vm224, 0.0
        %226 = vst.msk [vmem:[#allocation3 + $0x18] sm:$0x1] %vm224, 0.0
        %227 = vst.msk [vmem:[#allocation3 + $0x30] sm:$0x1] %vm224, 0.0
        %228 = vst.msk [vmem:[#allocation3 + $0x48] sm:$0x1] %vm224, 0.0
        %229 = vst.msk [vmem:[#allocation3 + $0x60] sm:$0x1] %vm224, 0.0
        %230 = vst.msk [vmem:[#allocation3 + $0x78] sm:$0x1] %vm224, 0.0
        %231 = vst.msk [vmem:[#allocation3 + $0x90] sm:$0x1] %vm224, 0.0
        %232 = vst.msk [vmem:[#allocation3 + $0xa8] sm:$0x1] %vm224, 0.0
        %233 = vst.msk [vmem:[#allocation3 + $0xc0] sm:$0x1] %vm224, 0.0
        %234 = vst.msk [vmem:[#allocation3 + $0xd8] sm:$0x1] %vm224, 0.0
        %235 = vst.msk [vmem:[#allocation3 + $0xf0] sm:$0x1] %vm224, 0.0
        %236 = vst.msk [vmem:[#allocation3 + $0x108] sm:$0x1] %vm224, 0.0
        %237 = vst.msk [vmem:[#allocation3 + $0x120] sm:$0x1] %vm224, 0.0
        %238 = vst.msk [vmem:[#allocation3 + $0x138] sm:$0x1] %vm224, 0.0
        %239 = vst.msk [vmem:[#allocation3 + $0x150] sm:$0x1] %vm224, 0.0
        %240 = vst.msk [vmem:[#allocation3 + $0x168] sm:$0x1] %vm224, 0.0
        %241 = vst.msk [vmem:[#allocation3 + $0x180] sm:$0x1] %vm224, 0.0
        %242 = vst.msk [vmem:[#allocation3 + $0x198] sm:$0x1] %vm224, 0.0
        %243 = vst.msk [vmem:[#allocation3 + $0x11] sm:$0x1] %vm224, 0.0
        %244 = vst.msk [vmem:[#allocation3 + $0x29] sm:$0x1] %vm224, 0.0
        %245 = vst.msk [vmem:[#allocation3 + $0x41] sm:$0x1] %vm224, 0.0
        %246 = vst.msk [vmem:[#allocation3 + $0x59] sm:$0x1] %vm224, 0.0
        %247 = vst.msk [vmem:[#allocation3 + $0x71] sm:$0x1] %vm224, 0.0
        %248 = vst.msk [vmem:[#allocation3 + $0x89] sm:$0x1] %vm224, 0.0
        %249 = vst.msk [vmem:[#allocation3 + $0xa1] sm:$0x1] %vm224, 0.0
        %250 = vst.msk [vmem:[#allocation3 + $0xb9] sm:$0x1] %vm224, 0.0
        %251 = vst.msk [vmem:[#allocation3 + $0xd1] sm:$0x1] %vm224, 0.0
        %252 = vst.msk [vmem:[#allocation3 + $0xe9] sm:$0x1] %vm224, 0.0
        %253 = vst.msk [vmem:[#allocation3 + $0x101] sm:$0x1] %vm224, 0.0
        %254 = vst.msk [vmem:[#allocation3 + $0x119] sm:$0x1] %vm224, 0.0
        %255 = vst.msk [vmem:[#allocation3 + $0x131] sm:$0x1] %vm224, 0.0
        %256 = vst.msk [vmem:[#allocation3 + $0x149] sm:$0x1] %vm224, 0.0
        %257 = vst.msk [vmem:[#allocation3 + $0x161] sm:$0x1] %vm224, 0.0
        %258 = vst.msk [vmem:[#allocation3 + $0x179] sm:$0x1] %vm224, 0.0
        %259 = vst.msk [vmem:[#allocation3 + $0x191] sm:$0x1] %vm224, 0.0
        %260 = vst.msk [vmem:[#allocation3 + $0x1a9] sm:$0x1] %vm224, 0.0
        %s261 = scalar_lea.vmem [#allocation3], 24
        %262 = vst.msk [vmem:[%s261 + $0x1] sm:$0xff] %vm215, %v183
        %263 = vst.msk [vmem:[%s261 + $0x9] sm:$0xff] %vm215, %v184
        %264 = vst.msk [vmem:[%s261 + $0x19] sm:$0xff] %vm215, %v185
        %265 = vst.msk [vmem:[%s261 + $0x21] sm:$0xff] %vm215, %v186
        %266 = vst.msk [vmem:[%s261 + $0x31] sm:$0xff] %vm215, %v187
        %267 = vst.msk [vmem:[%s261 + $0x39] sm:$0xff] %vm215, %v188
        %268 = vst.msk [vmem:[%s261 + $0x49] sm:$0xff] %vm215, %v189
        %269 = vst.msk [vmem:[%s261 + $0x51] sm:$0xff] %vm215, %v190
        %270 = vst.msk [vmem:[%s261 + $0x61] sm:$0xff] %vm215, %v191
        %271 = vst.msk [vmem:[%s261 + $0x69] sm:$0xff] %vm215, %v192
        %272 = vst.msk [vmem:[%s261 + $0x79] sm:$0xff] %vm215, %v193
        %273 = vst.msk [vmem:[%s261 + $0x81] sm:$0xff] %vm215, %v194
        %274 = vst.msk [vmem:[%s261 + $0x91] sm:$0xff] %vm215, %v195
        %275 = vst.msk [vmem:[%s261 + $0x99] sm:$0xff] %vm215, %v196
        %276 = vst.msk [vmem:[%s261 + $0xa9] sm:$0xff] %vm215, %v197
        %277 = vst.msk [vmem:[%s261 + $0xb1] sm:$0xff] %vm215, %v198
        %278 = vst.msk [vmem:[%s261 + $0xc1] sm:$0xff] %vm215, %v199
        %279 = vst.msk [vmem:[%s261 + $0xc9] sm:$0xff] %vm215, %v200
        %280 = vst.msk [vmem:[%s261 + $0xd9] sm:$0xff] %vm215, %v201
        %281 = vst.msk [vmem:[%s261 + $0xe1] sm:$0xff] %vm215, %v202
        %282 = vst.msk [vmem:[%s261 + $0xf1] sm:$0xff] %vm215, %v203
        %283 = vst.msk [vmem:[%s261 + $0xf9] sm:$0xff] %vm215, %v204
        %284 = vst.msk [vmem:[%s261 + $0x109] sm:$0xff] %vm215, %v205
        %285 = vst.msk [vmem:[%s261 + $0x111] sm:$0xff] %vm215, %v206
        %286 = vst.msk [vmem:[%s261 + $0x121] sm:$0xff] %vm215, %v207
        %287 = vst.msk [vmem:[%s261 + $0x129] sm:$0xff] %vm215, %v208
        %288 = vst.msk [vmem:[%s261 + $0x139] sm:$0xff] %vm215, %v209
        %289 = vst.msk [vmem:[%s261 + $0x141] sm:$0xff] %vm215, %v210
        %290 = vst.msk [vmem:[%s261 + $0x151] sm:$0xff] %vm215, %v211
        %291 = vst.msk [vmem:[%s261 + $0x159] sm:$0xff] %vm215, %v212
        %292 = vst.msk [vmem:[%s261 + $0x169] sm:$0xff] %vm215, %v213
        %293 = vst.msk [vmem:[%s261 + $0x171] sm:$0xff] %vm215, %v214
        %v294 = vld [vmem:[#allocation3] sm:$0xff]
        %v295 = vld [vmem:[#allocation3 + $0x8] sm:$0xff]
        %v296 = vld [vmem:[#allocation3 + $0x18] sm:$0xff]
        %v297 = vld [vmem:[#allocation3 + $0x20] sm:$0xff]
        %v298 = vld [vmem:[#allocation3 + $0x30] sm:$0xff]
        %v299 = vld [vmem:[#allocation3 + $0x38] sm:$0xff]
        %v300 = vld [vmem:[#allocation3 + $0x48] sm:$0xff]
        %v301 = vld [vmem:[#allocation3 + $0x50] sm:$0xff]
        %v302 = vld [vmem:[#allocation3 + $0x60] sm:$0xff]
        %v303 = vld [vmem:[#allocation3 + $0x68] sm:$0xff]
        %v304 = vld [vmem:[#allocation3 + $0x78] sm:$0xff]
        %v305 = vld [vmem:[#allocation3 + $0x80] sm:$0xff]
        %v306 = vld [vmem:[#allocation3 + $0x90] sm:$0xff]
        %v307 = vld [vmem:[#allocation3 + $0x98] sm:$0xff]
        %v308 = vld [vmem:[#allocation3 + $0xa8] sm:$0xff]
        %v309 = vld [vmem:[#allocation3 + $0xb0] sm:$0xff]
        %v310 = vld [vmem:[#allocation3 + $0xc0] sm:$0xff]
        %v311 = vld [vmem:[#allocation3 + $0xc8] sm:$0xff]
        %v312 = vld [vmem:[#allocation3 + $0xd8] sm:$0xff]
        %v313 = vld [vmem:[#allocation3 + $0xe0] sm:$0xff]
        %v314 = vld [vmem:[#allocation3 + $0xf0] sm:$0xff]
        %v315 = vld [vmem:[#allocation3 + $0xf8] sm:$0xff]
        %v316 = vld [vmem:[#allocation3 + $0x108] sm:$0xff]
        %v317 = vld [vmem:[#allocation3 + $0x110] sm:$0xff]
        %v318 = vld [vmem:[#allocation3 + $0x120] sm:$0xff]
        %v319 = vld [vmem:[#allocation3 + $0x128] sm:$0xff]
        %v320 = vld [vmem:[#allocation3 + $0x138] sm:$0xff]
        %v321 = vld [vmem:[#allocation3 + $0x140] sm:$0xff]
        %v322 = vld [vmem:[#allocation3 + $0x150] sm:$0xff]
        %v323 = vld [vmem:[#allocation3 + $0x158] sm:$0xff]
        %v324 = vld [vmem:[#allocation3 + $0x168] sm:$0xff]
        %v325 = vld [vmem:[#allocation3 + $0x170] sm:$0xff]
        %v326 = vpack.c.bf16 %v294, %v294
        %v327 = vpack.c.bf16 %v295, %v295
        %v328 = vpack.c.bf16 %v296, %v296
        %v329 = vpack.c.bf16 %v297, %v297
        %v330 = vpack.c.bf16 %v298, %v298
        %v331 = vpack.c.bf16 %v299, %v299
        %v332 = vpack.c.bf16 %v300, %v300
        %v333 = vpack.c.bf16 %v301, %v301
        %v334 = vpack.c.bf16 %v302, %v302
        %v335 = vpack.c.bf16 %v303, %v303
        %v336 = vpack.c.bf16 %v304, %v304
        %v337 = vpack.c.bf16 %v305, %v305
        %v338 = vpack.c.bf16 %v306, %v306
        %v339 = vpack.c.bf16 %v307, %v307
        %v340 = vpack.c.bf16 %v308, %v308
        %v341 = vpack.c.bf16 %v309, %v309
        %v342 = vpack.c.bf16 %v310, %v310
        %v343 = vpack.c.bf16 %v311, %v311
        %v344 = vpack.c.bf16 %v312, %v312
        %v345 = vpack.c.bf16 %v313, %v313
        %v346 = vpack.c.bf16 %v314, %v314
        %v347 = vpack.c.bf16 %v315, %v315
        %v348 = vpack.c.bf16 %v316, %v316
        %v349 = vpack.c.bf16 %v317, %v317
        %v350 = vpack.c.bf16 %v318, %v318
        %v351 = vpack.c.bf16 %v319, %v319
        %v352 = vpack.c.bf16 %v320, %v320
        %v353 = vpack.c.bf16 %v321, %v321
        %v354 = vpack.c.bf16 %v322, %v322
        %v355 = vpack.c.bf16 %v323, %v323
        %v356 = vpack.c.bf16 %v324, %v324
        %v357 = vpack.c.bf16 %v325, %v325
        %vm358 = vcmask 27648
        %359 = vst.msk [vmem:[#allocation2] sm:$0xf] %vm358, %v326
        %360 = vst.msk [vmem:[#allocation2 + $0x4] sm:$0xf] %vm358, %v327
        %361 = vst.msk [vmem:[#allocation2 + $0x8] sm:$0xf] %vm358, %v328
        %362 = vst.msk [vmem:[#allocation2 + $0xc] sm:$0xf] %vm358, %v329
        %363 = vst.msk [vmem:[#allocation2 + $0x10] sm:$0xf] %vm358, %v330
        %364 = vst.msk [vmem:[#allocation2 + $0x14] sm:$0xf] %vm358, %v331
        %365 = vst.msk [vmem:[#allocation2 + $0x18] sm:$0xf] %vm358, %v332
        %366 = vst.msk [vmem:[#allocation2 + $0x1c] sm:$0xf] %vm358, %v333
        %367 = vst.msk [vmem:[#allocation2 + $0x20] sm:$0xf] %vm358, %v334
        %368 = vst.msk [vmem:[#allocation2 + $0x24] sm:$0xf] %vm358, %v335
        %369 = vst.msk [vmem:[#allocation2 + $0x28] sm:$0xf] %vm358, %v336
        %370 = vst.msk [vmem:[#allocation2 + $0x2c] sm:$0xf] %vm358, %v337
        %371 = vst.msk [vmem:[#allocation2 + $0x30] sm:$0xf] %vm358, %v338
        %372 = vst.msk [vmem:[#allocation2 + $0x34] sm:$0xf] %vm358, %v339
        %373 = vst.msk [vmem:[#allocation2 + $0x38] sm:$0xf] %vm358, %v340
        %374 = vst.msk [vmem:[#allocation2 + $0x3c] sm:$0xf] %vm358, %v341
        %375 = vst.msk [vmem:[#allocation2 + $0x40] sm:$0xf] %vm358, %v342
        %376 = vst.msk [vmem:[#allocation2 + $0x44] sm:$0xf] %vm358, %v343
        %377 = vst.msk [vmem:[#allocation2 + $0x48] sm:$0xf] %vm358, %v344
        %378 = vst.msk [vmem:[#allocation2 + $0x4c] sm:$0xf] %vm358, %v345
        %379 = vst.msk [vmem:[#allocation2 + $0x50] sm:$0xf] %vm358, %v346
        %380 = vst.msk [vmem:[#allocation2 + $0x54] sm:$0xf] %vm358, %v347
        %381 = vst.msk [vmem:[#allocation2 + $0x58] sm:$0xf] %vm358, %v348
        %382 = vst.msk [vmem:[#allocation2 + $0x5c] sm:$0xf] %vm358, %v349
        %383 = vst.msk [vmem:[#allocation2 + $0x60] sm:$0xf] %vm358, %v350
        %384 = vst.msk [vmem:[#allocation2 + $0x64] sm:$0xf] %vm358, %v351
        %385 = vst.msk [vmem:[#allocation2 + $0x68] sm:$0xf] %vm358, %v352
        %386 = vst.msk [vmem:[#allocation2 + $0x6c] sm:$0xf] %vm358, %v353
        %387 = vst.msk [vmem:[#allocation2 + $0x70] sm:$0xf] %vm358, %v354
        %388 = vst.msk [vmem:[#allocation2 + $0x74] sm:$0xf] %vm358, %v355
        %389 = vst.msk [vmem:[#allocation2 + $0x78] sm:$0xf] %vm358, %v356
        %390 = vst.msk [vmem:[#allocation2 + $0x7c] sm:$0xf] %vm358, %v357
        %v391 = vld [vmem:[#allocation3 + $0x1] sm:$0xff]
        %v392 = vld [vmem:[#allocation3 + $0x9] sm:$0xff]
        %v393 = vld [vmem:[#allocation3 + $0x19] sm:$0xff]
        %v394 = vld [vmem:[#allocation3 + $0x21] sm:$0xff]
        %v395 = vld [vmem:[#allocation3 + $0x31] sm:$0xff]
        %v396 = vld [vmem:[#allocation3 + $0x39] sm:$0xff]
        %v397 = vld [vmem:[#allocation3 + $0x49] sm:$0xff]
        %v398 = vld [vmem:[#allocation3 + $0x51] sm:$0xff]
        %v399 = vld [vmem:[#allocation3 + $0x61] sm:$0xff]
        %v400 = vld [vmem:[#allocation3 + $0x69] sm:$0xff]
        %v401 = vld [vmem:[#allocation3 + $0x79] sm:$0xff]
        %v402 = vld [vmem:[#allocation3 + $0x81] sm:$0xff]
        %v403 = vld [vmem:[#allocation3 + $0x91] sm:$0xff]
        %v404 = vld [vmem:[#allocation3 + $0x99] sm:$0xff]
        %v405 = vld [vmem:[#allocation3 + $0xa9] sm:$0xff]
        %v406 = vld [vmem:[#allocation3 + $0xb1] sm:$0xff]
        %v407 = vld [vmem:[#allocation3 + $0xc1] sm:$0xff]
        %v408 = vld [vmem:[#allocation3 + $0xc9] sm:$0xff]
        %v409 = vld [vmem:[#allocation3 + $0xd9] sm:$0xff]
        %v410 = vld [vmem:[#allocation3 + $0xe1] sm:$0xff]
        %v411 = vld [vmem:[#allocation3 + $0xf1] sm:$0xff]
        %v412 = vld [vmem:[#allocation3 + $0xf9] sm:$0xff]
        %v413 = vld [vmem:[#allocation3 + $0x109] sm:$0xff]
        %v414 = vld [vmem:[#allocation3 + $0x111] sm:$0xff]
        %v415 = vld [vmem:[#allocation3 + $0x121] sm:$0xff]
        %v416 = vld [vmem:[#allocation3 + $0x129] sm:$0xff]
        %v417 = vld [vmem:[#allocation3 + $0x139] sm:$0xff]
        %v418 = vld [vmem:[#allocation3 + $0x141] sm:$0xff]
        %v419 = vld [vmem:[#allocation3 + $0x151] sm:$0xff]
        %v420 = vld [vmem:[#allocation3 + $0x159] sm:$0xff]
        %v421 = vld [vmem:[#allocation3 + $0x169] sm:$0xff]
        %v422 = vld [vmem:[#allocation3 + $0x171] sm:$0xff]
        %v423 = vpack.c.bf16 %v391, %v391
        %v424 = vpack.c.bf16 %v392, %v392
        %v425 = vpack.c.bf16 %v393, %v393
        %v426 = vpack.c.bf16 %v394, %v394
        %v427 = vpack.c.bf16 %v395, %v395
        %v428 = vpack.c.bf16 %v396, %v396
        %v429 = vpack.c.bf16 %v397, %v397
        %v430 = vpack.c.bf16 %v398, %v398
        %v431 = vpack.c.bf16 %v399, %v399
        %v432 = vpack.c.bf16 %v400, %v400
        %v433 = vpack.c.bf16 %v401, %v401
        %v434 = vpack.c.bf16 %v402, %v402
        %v435 = vpack.c.bf16 %v403, %v403
        %v436 = vpack.c.bf16 %v404, %v404
        %v437 = vpack.c.bf16 %v405, %v405
        %v438 = vpack.c.bf16 %v406, %v406
        %v439 = vpack.c.bf16 %v407, %v407
        %v440 = vpack.c.bf16 %v408, %v408
        %v441 = vpack.c.bf16 %v409, %v409
        %v442 = vpack.c.bf16 %v410, %v410
        %v443 = vpack.c.bf16 %v411, %v411
        %v444 = vpack.c.bf16 %v412, %v412
        %v445 = vpack.c.bf16 %v413, %v413
        %v446 = vpack.c.bf16 %v414, %v414
        %v447 = vpack.c.bf16 %v415, %v415
        %v448 = vpack.c.bf16 %v416, %v416
        %v449 = vpack.c.bf16 %v417, %v417
        %v450 = vpack.c.bf16 %v418, %v418
        %v451 = vpack.c.bf16 %v419, %v419
        %v452 = vpack.c.bf16 %v420, %v420
        %v453 = vpack.c.bf16 %v421, %v421
        %v454 = vpack.c.bf16 %v422, %v422
        %487 = vrot.lane.b32.xlu0 %v423, 4
        %v488 = vpop.permute.xlu0 %487
        %489 = vrot.lane.b32.xlu0 %v424, 4
        %v490 = vpop.permute.xlu0 %489
        %491 = vrot.lane.b32.xlu0 %v425, 4
        %v492 = vpop.permute.xlu0 %491
        %493 = vrot.lane.b32.xlu0 %v426, 4
        %v494 = vpop.permute.xlu0 %493
        %495 = vrot.lane.b32.xlu0 %v427, 4
        %v496 = vpop.permute.xlu0 %495
        %497 = vrot.lane.b32.xlu0 %v428, 4
        %v498 = vpop.permute.xlu0 %497
        %499 = vrot.lane.b32.xlu0 %v429, 4
        %v500 = vpop.permute.xlu0 %499
        %501 = vrot.lane.b32.xlu0 %v430, 4
        %v502 = vpop.permute.xlu0 %501
        %503 = vrot.lane.b32.xlu0 %v431, 4
        %v504 = vpop.permute.xlu0 %503
        %505 = vrot.lane.b32.xlu0 %v432, 4
        %v506 = vpop.permute.xlu0 %505
        %507 = vrot.lane.b32.xlu0 %v433, 4
        %v508 = vpop.permute.xlu0 %507
        %509 = vrot.lane.b32.xlu0 %v434, 4
        %v510 = vpop.permute.xlu0 %509
        %511 = vrot.lane.b32.xlu0 %v435, 4
        %v512 = vpop.permute.xlu0 %511
        %513 = vrot.lane.b32.xlu0 %v436, 4
        %v514 = vpop.permute.xlu0 %513
        %515 = vrot.lane.b32.xlu0 %v437, 4
        %v516 = vpop.permute.xlu0 %515
        %517 = vrot.lane.b32.xlu0 %v438, 4
        %v518 = vpop.permute.xlu0 %517
        %519 = vrot.lane.b32.xlu0 %v439, 4
        %v520 = vpop.permute.xlu0 %519
        %521 = vrot.lane.b32.xlu0 %v440, 4
        %v522 = vpop.permute.xlu0 %521
        %523 = vrot.lane.b32.xlu0 %v441, 4
        %v524 = vpop.permute.xlu0 %523
        %525 = vrot.lane.b32.xlu0 %v442, 4
        %v526 = vpop.permute.xlu0 %525
        %527 = vrot.lane.b32.xlu0 %v443, 4
        %v528 = vpop.permute.xlu0 %527
        %529 = vrot.lane.b32.xlu0 %v444, 4
        %v530 = vpop.permute.xlu0 %529
        %531 = vrot.lane.b32.xlu0 %v445, 4
        %v532 = vpop.permute.xlu0 %531
        %533 = vrot.lane.b32.xlu0 %v446, 4
        %v534 = vpop.permute.xlu0 %533
        %535 = vrot.lane.b32.xlu0 %v447, 4
        %v536 = vpop.permute.xlu0 %535
        %537 = vrot.lane.b32.xlu0 %v448, 4
        %v538 = vpop.permute.xlu0 %537
        %539 = vrot.lane.b32.xlu0 %v449, 4
        %v540 = vpop.permute.xlu0 %539
        %541 = vrot.lane.b32.xlu0 %v450, 4
        %v542 = vpop.permute.xlu0 %541
        %543 = vrot.lane.b32.xlu0 %v451, 4
        %v544 = vpop.permute.xlu0 %543
        %545 = vrot.lane.b32.xlu0 %v452, 4
        %v546 = vpop.permute.xlu0 %545
        %547 = vrot.lane.b32.xlu0 %v453, 4
        %v548 = vpop.permute.xlu0 %547
        %549 = vrot.lane.b32.xlu0 %v454, 4
        %v550 = vpop.permute.xlu0 %549
        %vm583 = vcmask 60448
        %584 = vst.msk [vmem:[#allocation2] sm:$0xf] %vm583, %v488
        %585 = vst.msk [vmem:[#allocation2 + $0x4] sm:$0xf] %vm583, %v490
        %586 = vst.msk [vmem:[#allocation2 + $0x8] sm:$0xf] %vm583, %v492
        %587 = vst.msk [vmem:[#allocation2 + $0xc] sm:$0xf] %vm583, %v494
        %588 = vst.msk [vmem:[#allocation2 + $0x10] sm:$0xf] %vm583, %v496
        %589 = vst.msk [vmem:[#allocation2 + $0x14] sm:$0xf] %vm583, %v498
        %590 = vst.msk [vmem:[#allocation2 + $0x18] sm:$0xf] %vm583, %v500
        %591 = vst.msk [vmem:[#allocation2 + $0x1c] sm:$0xf] %vm583, %v502
        %592 = vst.msk [vmem:[#allocation2 + $0x20] sm:$0xf] %vm583, %v504
        %593 = vst.msk [vmem:[#allocation2 + $0x24] sm:$0xf] %vm583, %v506
        %594 = vst.msk [vmem:[#allocation2 + $0x28] sm:$0xf] %vm583, %v508
        %595 = vst.msk [vmem:[#allocation2 + $0x2c] sm:$0xf] %vm583, %v510
        %596 = vst.msk [vmem:[#allocation2 + $0x30] sm:$0xf] %vm583, %v512
        %597 = vst.msk [vmem:[#allocation2 + $0x34] sm:$0xf] %vm583, %v514
        %598 = vst.msk [vmem:[#allocation2 + $0x38] sm:$0xf] %vm583, %v516
        %599 = vst.msk [vmem:[#allocation2 + $0x3c] sm:$0xf] %vm583, %v518
        %600 = vst.msk [vmem:[#allocation2 + $0x40] sm:$0xf] %vm583, %v520
        %601 = vst.msk [vmem:[#allocation2 + $0x44] sm:$0xf] %vm583, %v522
        %602 = vst.msk [vmem:[#allocation2 + $0x48] sm:$0xf] %vm583, %v524
        %603 = vst.msk [vmem:[#allocation2 + $0x4c] sm:$0xf] %vm583, %v526
        %604 = vst.msk [vmem:[#allocation2 + $0x50] sm:$0xf] %vm583, %v528
        %605 = vst.msk [vmem:[#allocation2 + $0x54] sm:$0xf] %vm583, %v530
        %606 = vst.msk [vmem:[#allocation2 + $0x58] sm:$0xf] %vm583, %v532
        %607 = vst.msk [vmem:[#allocation2 + $0x5c] sm:$0xf] %vm583, %v534
        %608 = vst.msk [vmem:[#allocation2 + $0x60] sm:$0xf] %vm583, %v536
        %609 = vst.msk [vmem:[#allocation2 + $0x64] sm:$0xf] %vm583, %v538
        %610 = vst.msk [vmem:[#allocation2 + $0x68] sm:$0xf] %vm583, %v540
        %611 = vst.msk [vmem:[#allocation2 + $0x6c] sm:$0xf] %vm583, %v542
        %612 = vst.msk [vmem:[#allocation2 + $0x70] sm:$0xf] %vm583, %v544
        %613 = vst.msk [vmem:[#allocation2 + $0x74] sm:$0xf] %vm583, %v546
        %614 = vst.msk [vmem:[#allocation2 + $0x78] sm:$0xf] %vm583, %v548
        %615 = vst.msk [vmem:[#allocation2 + $0x7c] sm:$0xf] %vm583, %v550
        %v616 = vld [vmem:[#allocation3 + $0x2] sm:$0xff]
        %v617 = vld [vmem:[#allocation3 + $0xa] sm:$0xff]
        %v618 = vld [vmem:[#allocation3 + $0x1a] sm:$0xff]
        %v619 = vld [vmem:[#allocation3 + $0x22] sm:$0xff]
        %v620 = vld [vmem:[#allocation3 + $0x32] sm:$0xff]
        %v621 = vld [vmem:[#allocation3 + $0x3a] sm:$0xff]
        %v622 = vld [vmem:[#allocation3 + $0x4a] sm:$0xff]
        %v623 = vld [vmem:[#allocation3 + $0x52] sm:$0xff]
        %v624 = vld [vmem:[#allocation3 + $0x62] sm:$0xff]
        %v625 = vld [vmem:[#allocation3 + $0x6a] sm:$0xff]
        %v626 = vld [vmem:[#allocation3 + $0x7a] sm:$0xff]
        %v627 = vld [vmem:[#allocation3 + $0x82] sm:$0xff]
        %v628 = vld [vmem:[#allocation3 + $0x92] sm:$0xff]
        %v629 = vld [vmem:[#allocation3 + $0x9a] sm:$0xff]
        %v630 = vld [vmem:[#allocation3 + $0xaa] sm:$0xff]
        %v631 = vld [vmem:[#allocation3 + $0xb2] sm:$0xff]
        %v632 = vld [vmem:[#allocation3 + $0xc2] sm:$0xff]
        %v633 = vld [vmem:[#allocation3 + $0xca] sm:$0xff]
        %v634 = vld [vmem:[#allocation3 + $0xda] sm:$0xff]
        %v635 = vld [vmem:[#allocation3 + $0xe2] sm:$0xff]
        %v636 = vld [vmem:[#allocation3 + $0xf2] sm:$0xff]
        %v637 = vld [vmem:[#allocation3 + $0xfa] sm:$0xff]
        %v638 = vld [vmem:[#allocation3 + $0x10a] sm:$0xff]
        %v639 = vld [vmem:[#allocation3 + $0x112] sm:$0xff]
        %v640 = vld [vmem:[#allocation3 + $0x122] sm:$0xff]
        %v641 = vld [vmem:[#allocation3 + $0x12a] sm:$0xff]
        %v642 = vld [vmem:[#allocation3 + $0x13a] sm:$0xff]
        %v643 = vld [vmem:[#allocation3 + $0x142] sm:$0xff]
        %v644 = vld [vmem:[#allocation3 + $0x152] sm:$0xff]
        %v645 = vld [vmem:[#allocation3 + $0x15a] sm:$0xff]
        %v646 = vld [vmem:[#allocation3 + $0x16a] sm:$0xff]
        %v647 = vld [vmem:[#allocation3 + $0x172] sm:$0xff]
        %v648 = vpack.c.bf16 %v616, %v616
        %v649 = vpack.c.bf16 %v617, %v617
        %v650 = vpack.c.bf16 %v618, %v618
        %v651 = vpack.c.bf16 %v619, %v619
        %v652 = vpack.c.bf16 %v620, %v620
        %v653 = vpack.c.bf16 %v621, %v621
        %v654 = vpack.c.bf16 %v622, %v622
        %v655 = vpack.c.bf16 %v623, %v623
        %v656 = vpack.c.bf16 %v624, %v624
        %v657 = vpack.c.bf16 %v625, %v625
        %v658 = vpack.c.bf16 %v626, %v626
        %v659 = vpack.c.bf16 %v627, %v627
        %v660 = vpack.c.bf16 %v628, %v628
        %v661 = vpack.c.bf16 %v629, %v629
        %v662 = vpack.c.bf16 %v630, %v630
        %v663 = vpack.c.bf16 %v631, %v631
        %v664 = vpack.c.bf16 %v632, %v632
        %v665 = vpack.c.bf16 %v633, %v633
        %v666 = vpack.c.bf16 %v634, %v634
        %v667 = vpack.c.bf16 %v635, %v635
        %v668 = vpack.c.bf16 %v636, %v636
        %v669 = vpack.c.bf16 %v637, %v637
        %v670 = vpack.c.bf16 %v638, %v638
        %v671 = vpack.c.bf16 %v639, %v639
        %v672 = vpack.c.bf16 %v640, %v640
        %v673 = vpack.c.bf16 %v641, %v641
        %v674 = vpack.c.bf16 %v642, %v642
        %v675 = vpack.c.bf16 %v643, %v643
        %v676 = vpack.c.bf16 %v644, %v644
        %v677 = vpack.c.bf16 %v645, %v645
        %v678 = vpack.c.bf16 %v646, %v646
        %v679 = vpack.c.bf16 %v647, %v647
        %712 = vrot.lane.b32.xlu0 %v648, 8
        %v713 = vpop.permute.xlu0 %712
        %714 = vrot.lane.b32.xlu0 %v649, 8
        %v715 = vpop.permute.xlu0 %714
        %716 = vrot.lane.b32.xlu0 %v650, 8
        %v717 = vpop.permute.xlu0 %716
        %718 = vrot.lane.b32.xlu0 %v651, 8
        %v719 = vpop.permute.xlu0 %718
        %720 = vrot.lane.b32.xlu0 %v652, 8
        %v721 = vpop.permute.xlu0 %720
        %722 = vrot.lane.b32.xlu0 %v653, 8
        %v723 = vpop.permute.xlu0 %722
        %724 = vrot.lane.b32.xlu0 %v654, 8
        %v725 = vpop.permute.xlu0 %724
        %726 = vrot.lane.b32.xlu0 %v655, 8
        %v727 = vpop.permute.xlu0 %726
        %728 = vrot.lane.b32.xlu0 %v656, 8
        %v729 = vpop.permute.xlu0 %728
        %730 = vrot.lane.b32.xlu0 %v657, 8
        %v731 = vpop.permute.xlu0 %730
        %732 = vrot.lane.b32.xlu0 %v658, 8
        %v733 = vpop.permute.xlu0 %732
        %734 = vrot.lane.b32.xlu0 %v659, 8
        %v735 = vpop.permute.xlu0 %734
        %736 = vrot.lane.b32.xlu0 %v660, 8
        %v737 = vpop.permute.xlu0 %736
        %738 = vrot.lane.b32.xlu0 %v661, 8
        %v739 = vpop.permute.xlu0 %738
        %740 = vrot.lane.b32.xlu0 %v662, 8
        %v741 = vpop.permute.xlu0 %740
        %742 = vrot.lane.b32.xlu0 %v663, 8
        %v743 = vpop.permute.xlu0 %742
        %744 = vrot.lane.b32.xlu0 %v664, 8
        %v745 = vpop.permute.xlu0 %744
        %746 = vrot.lane.b32.xlu0 %v665, 8
        %v747 = vpop.permute.xlu0 %746
        %748 = vrot.lane.b32.xlu0 %v666, 8
        %v749 = vpop.permute.xlu0 %748
        %750 = vrot.lane.b32.xlu0 %v667, 8
        %v751 = vpop.permute.xlu0 %750
        %752 = vrot.lane.b32.xlu0 %v668, 8
        %v753 = vpop.permute.xlu0 %752
        %754 = vrot.lane.b32.xlu0 %v669, 8
        %v755 = vpop.permute.xlu0 %754
        %756 = vrot.lane.b32.xlu0 %v670, 8
        %v757 = vpop.permute.xlu0 %756
        %758 = vrot.lane.b32.xlu0 %v671, 8
        %v759 = vpop.permute.xlu0 %758
        %760 = vrot.lane.b32.xlu0 %v672, 8
        %v761 = vpop.permute.xlu0 %760
        %762 = vrot.lane.b32.xlu0 %v673, 8
        %v763 = vpop.permute.xlu0 %762
        %764 = vrot.lane.b32.xlu0 %v674, 8
        %v765 = vpop.permute.xlu0 %764
        %766 = vrot.lane.b32.xlu0 %v675, 8
        %v767 = vpop.permute.xlu0 %766
        %768 = vrot.lane.b32.xlu0 %v676, 8
        %v769 = vpop.permute.xlu0 %768
        %770 = vrot.lane.b32.xlu0 %v677, 8
        %v771 = vpop.permute.xlu0 %770
        %772 = vrot.lane.b32.xlu0 %v678, 8
        %v773 = vpop.permute.xlu0 %772
        %774 = vrot.lane.b32.xlu0 %v679, 8
        %v775 = vpop.permute.xlu0 %774
        %vm808 = vcmask 93248
        %809 = vst.msk [vmem:[#allocation2] sm:$0xf] %vm808, %v713
        %810 = vst.msk [vmem:[#allocation2 + $0x4] sm:$0xf] %vm808, %v715
        %811 = vst.msk [vmem:[#allocation2 + $0x8] sm:$0xf] %vm808, %v717
        %812 = vst.msk [vmem:[#allocation2 + $0xc] sm:$0xf] %vm808, %v719
        %813 = vst.msk [vmem:[#allocation2 + $0x10] sm:$0xf] %vm808, %v721
        %814 = vst.msk [vmem:[#allocation2 + $0x14] sm:$0xf] %vm808, %v723
        %815 = vst.msk [vmem:[#allocation2 + $0x18] sm:$0xf] %vm808, %v725
        %816 = vst.msk [vmem:[#allocation2 + $0x1c] sm:$0xf] %vm808, %v727
        %817 = vst.msk [vmem:[#allocation2 + $0x20] sm:$0xf] %vm808, %v729
        %818 = vst.msk [vmem:[#allocation2 + $0x24] sm:$0xf] %vm808, %v731
        %819 = vst.msk [vmem:[#allocation2 + $0x28] sm:$0xf] %vm808, %v733
        %820 = vst.msk [vmem:[#allocation2 + $0x2c] sm:$0xf] %vm808, %v735
        %821 = vst.msk [vmem:[#allocation2 + $0x30] sm:$0xf] %vm808, %v737
        %822 = vst.msk [vmem:[#allocation2 + $0x34] sm:$0xf] %vm808, %v739
        %823 = vst.msk [vmem:[#allocation2 + $0x38] sm:$0xf] %vm808, %v741
        %824 = vst.msk [vmem:[#allocation2 + $0x3c] sm:$0xf] %vm808, %v743
        %825 = vst.msk [vmem:[#allocation2 + $0x40] sm:$0xf] %vm808, %v745
        %826 = vst.msk [vmem:[#allocation2 + $0x44] sm:$0xf] %vm808, %v747
        %827 = vst.msk [vmem:[#allocation2 + $0x48] sm:$0xf] %vm808, %v749
        %828 = vst.msk [vmem:[#allocation2 + $0x4c] sm:$0xf] %vm808, %v751
        %829 = vst.msk [vmem:[#allocation2 + $0x50] sm:$0xf] %vm808, %v753
        %830 = vst.msk [vmem:[#allocation2 + $0x54] sm:$0xf] %vm808, %v755
        %831 = vst.msk [vmem:[#allocation2 + $0x58] sm:$0xf] %vm808, %v757
        %832 = vst.msk [vmem:[#allocation2 + $0x5c] sm:$0xf] %vm808, %v759
        %833 = vst.msk [vmem:[#allocation2 + $0x60] sm:$0xf] %vm808, %v761
        %834 = vst.msk [vmem:[#allocation2 + $0x64] sm:$0xf] %vm808, %v763
        %835 = vst.msk [vmem:[#allocation2 + $0x68] sm:$0xf] %vm808, %v765
        %836 = vst.msk [vmem:[#allocation2 + $0x6c] sm:$0xf] %vm808, %v767
        %837 = vst.msk [vmem:[#allocation2 + $0x70] sm:$0xf] %vm808, %v769
        %838 = vst.msk [vmem:[#allocation2 + $0x74] sm:$0xf] %vm808, %v771
        %839 = vst.msk [vmem:[#allocation2 + $0x78] sm:$0xf] %vm808, %v773
        %840 = vst.msk [vmem:[#allocation2 + $0x7c] sm:$0xf] %vm808, %v775
        %v841 = vld [vmem:[%s261] sm:$0xff]
        %v842 = vld [vmem:[%s261 + $0x8] sm:$0xff]
        %v843 = vld [vmem:[%s261 + $0x18] sm:$0xff]
        %v844 = vld [vmem:[%s261 + $0x20] sm:$0xff]
        %v845 = vld [vmem:[%s261 + $0x30] sm:$0xff]
        %v846 = vld [vmem:[%s261 + $0x38] sm:$0xff]
        %v847 = vld [vmem:[%s261 + $0x48] sm:$0xff]
        %v848 = vld [vmem:[%s261 + $0x50] sm:$0xff]
        %v849 = vld [vmem:[%s261 + $0x60] sm:$0xff]
        %v850 = vld [vmem:[%s261 + $0x68] sm:$0xff]
        %v851 = vld [vmem:[%s261 + $0x78] sm:$0xff]
        %v852 = vld [vmem:[%s261 + $0x80] sm:$0xff]
        %v853 = vld [vmem:[%s261 + $0x90] sm:$0xff]
        %v854 = vld [vmem:[%s261 + $0x98] sm:$0xff]
        %v855 = vld [vmem:[%s261 + $0xa8] sm:$0xff]
        %v856 = vld [vmem:[%s261 + $0xb0] sm:$0xff]
        %v857 = vld [vmem:[%s261 + $0xc0] sm:$0xff]
        %v858 = vld [vmem:[%s261 + $0xc8] sm:$0xff]
        %v859 = vld [vmem:[%s261 + $0xd8] sm:$0xff]
        %v860 = vld [vmem:[%s261 + $0xe0] sm:$0xff]
        %v861 = vld [vmem:[%s261 + $0xf0] sm:$0xff]
        %v862 = vld [vmem:[%s261 + $0xf8] sm:$0xff]
        %v863 = vld [vmem:[%s261 + $0x108] sm:$0xff]
        %v864 = vld [vmem:[%s261 + $0x110] sm:$0xff]
        %v865 = vld [vmem:[%s261 + $0x120] sm:$0xff]
        %v866 = vld [vmem:[%s261 + $0x128] sm:$0xff]
        %v867 = vld [vmem:[%s261 + $0x138] sm:$0xff]
        %v868 = vld [vmem:[%s261 + $0x140] sm:$0xff]
        %v869 = vld [vmem:[%s261 + $0x150] sm:$0xff]
        %v870 = vld [vmem:[%s261 + $0x158] sm:$0xff]
        %v871 = vld [vmem:[%s261 + $0x168] sm:$0xff]
        %v872 = vld [vmem:[%s261 + $0x170] sm:$0xff]
        %v873 = vpack.c.bf16 %v841, %v841
        %v874 = vpack.c.bf16 %v842, %v842
        %v875 = vpack.c.bf16 %v843, %v843
        %v876 = vpack.c.bf16 %v844, %v844
        %v877 = vpack.c.bf16 %v845, %v845
        %v878 = vpack.c.bf16 %v846, %v846
        %v879 = vpack.c.bf16 %v847, %v847
        %v880 = vpack.c.bf16 %v848, %v848
        %v881 = vpack.c.bf16 %v849, %v849
        %v882 = vpack.c.bf16 %v850, %v850
        %v883 = vpack.c.bf16 %v851, %v851
        %v884 = vpack.c.bf16 %v852, %v852
        %v885 = vpack.c.bf16 %v853, %v853
        %v886 = vpack.c.bf16 %v854, %v854
        %v887 = vpack.c.bf16 %v855, %v855
        %v888 = vpack.c.bf16 %v856, %v856
        %v889 = vpack.c.bf16 %v857, %v857
        %v890 = vpack.c.bf16 %v858, %v858
        %v891 = vpack.c.bf16 %v859, %v859
        %v892 = vpack.c.bf16 %v860, %v860
        %v893 = vpack.c.bf16 %v861, %v861
        %v894 = vpack.c.bf16 %v862, %v862
        %v895 = vpack.c.bf16 %v863, %v863
        %v896 = vpack.c.bf16 %v864, %v864
        %v897 = vpack.c.bf16 %v865, %v865
        %v898 = vpack.c.bf16 %v866, %v866
        %v899 = vpack.c.bf16 %v867, %v867
        %v900 = vpack.c.bf16 %v868, %v868
        %v901 = vpack.c.bf16 %v869, %v869
        %v902 = vpack.c.bf16 %v870, %v870
        %v903 = vpack.c.bf16 %v871, %v871
        %v904 = vpack.c.bf16 %v872, %v872
        %937 = vrot.lane.b32.xlu0 %v873, 12
        %v938 = vpop.permute.xlu0 %937
        %939 = vrot.lane.b32.xlu0 %v874, 12
        %v940 = vpop.permute.xlu0 %939
        %941 = vrot.lane.b32.xlu0 %v875, 12
        %v942 = vpop.permute.xlu0 %941
        %943 = vrot.lane.b32.xlu0 %v876, 12
        %v944 = vpop.permute.xlu0 %943
        %945 = vrot.lane.b32.xlu0 %v877, 12
        %v946 = vpop.permute.xlu0 %945
        %947 = vrot.lane.b32.xlu0 %v878, 12
        %v948 = vpop.permute.xlu0 %947
        %949 = vrot.lane.b32.xlu0 %v879, 12
        %v950 = vpop.permute.xlu0 %949
        %951 = vrot.lane.b32.xlu0 %v880, 12
        %v952 = vpop.permute.xlu0 %951
        %953 = vrot.lane.b32.xlu0 %v881, 12
        %v954 = vpop.permute.xlu0 %953
        %955 = vrot.lane.b32.xlu0 %v882, 12
        %v956 = vpop.permute.xlu0 %955
        %957 = vrot.lane.b32.xlu0 %v883, 12
        %v958 = vpop.permute.xlu0 %957
        %959 = vrot.lane.b32.xlu0 %v884, 12
        %v960 = vpop.permute.xlu0 %959
        %961 = vrot.lane.b32.xlu0 %v885, 12
        %v962 = vpop.permute.xlu0 %961
        %963 = vrot.lane.b32.xlu0 %v886, 12
        %v964 = vpop.permute.xlu0 %963
        %965 = vrot.lane.b32.xlu0 %v887, 12
        %v966 = vpop.permute.xlu0 %965
        %967 = vrot.lane.b32.xlu0 %v888, 12
        %v968 = vpop.permute.xlu0 %967
        %969 = vrot.lane.b32.xlu0 %v889, 12
        %v970 = vpop.permute.xlu0 %969
        %971 = vrot.lane.b32.xlu0 %v890, 12
        %v972 = vpop.permute.xlu0 %971
        %973 = vrot.lane.b32.xlu0 %v891, 12
        %v974 = vpop.permute.xlu0 %973
        %975 = vrot.lane.b32.xlu0 %v892, 12
        %v976 = vpop.permute.xlu0 %975
        %977 = vrot.lane.b32.xlu0 %v893, 12
        %v978 = vpop.permute.xlu0 %977
        %979 = vrot.lane.b32.xlu0 %v894, 12
        %v980 = vpop.permute.xlu0 %979
        %981 = vrot.lane.b32.xlu0 %v895, 12
        %v982 = vpop.permute.xlu0 %981
        %983 = vrot.lane.b32.xlu0 %v896, 12
        %v984 = vpop.permute.xlu0 %983
        %985 = vrot.lane.b32.xlu0 %v897, 12
        %v986 = vpop.permute.xlu0 %985
        %987 = vrot.lane.b32.xlu0 %v898, 12
        %v988 = vpop.permute.xlu0 %987
        %989 = vrot.lane.b32.xlu0 %v899, 12
        %v990 = vpop.permute.xlu0 %989
        %991 = vrot.lane.b32.xlu0 %v900, 12
        %v992 = vpop.permute.xlu0 %991
        %993 = vrot.lane.b32.xlu0 %v901, 12
        %v994 = vpop.permute.xlu0 %993
        %995 = vrot.lane.b32.xlu0 %v902, 12
        %v996 = vpop.permute.xlu0 %995
        %997 = vrot.lane.b32.xlu0 %v903, 12
        %v998 = vpop.permute.xlu0 %997
        %999 = vrot.lane.b32.xlu0 %v904, 12
        %v1000 = vpop.permute.xlu0 %999
        %vm1033 = vcmask 126048
        %1034 = vst.msk [vmem:[#allocation2] sm:$0xf] %vm1033, %v938
        %1035 = vst.msk [vmem:[#allocation2 + $0x4] sm:$0xf] %vm1033, %v940
        %1036 = vst.msk [vmem:[#allocation2 + $0x8] sm:$0xf] %vm1033, %v942
        %1037 = vst.msk [vmem:[#allocation2 + $0xc] sm:$0xf] %vm1033, %v944
        %1038 = vst.msk [vmem:[#allocation2 + $0x10] sm:$0xf] %vm1033, %v946
        %1039 = vst.msk [vmem:[#allocation2 + $0x14] sm:$0xf] %vm1033, %v948
        %1040 = vst.msk [vmem:[#allocation2 + $0x18] sm:$0xf] %vm1033, %v950
        %1041 = vst.msk [vmem:[#allocation2 + $0x1c] sm:$0xf] %vm1033, %v952
        %1042 = vst.msk [vmem:[#allocation2 + $0x20] sm:$0xf] %vm1033, %v954
        %1043 = vst.msk [vmem:[#allocation2 + $0x24] sm:$0xf] %vm1033, %v956
        %1044 = vst.msk [vmem:[#allocation2 + $0x28] sm:$0xf] %vm1033, %v958
        %1045 = vst.msk [vmem:[#allocation2 + $0x2c] sm:$0xf] %vm1033, %v960
        %1046 = vst.msk [vmem:[#allocation2 + $0x30] sm:$0xf] %vm1033, %v962
        %1047 = vst.msk [vmem:[#allocation2 + $0x34] sm:$0xf] %vm1033, %v964
        %1048 = vst.msk [vmem:[#allocation2 + $0x38] sm:$0xf] %vm1033, %v966
        %1049 = vst.msk [vmem:[#allocation2 + $0x3c] sm:$0xf] %vm1033, %v968
        %1050 = vst.msk [vmem:[#allocation2 + $0x40] sm:$0xf] %vm1033, %v970
        %1051 = vst.msk [vmem:[#allocation2 + $0x44] sm:$0xf] %vm1033, %v972
        %1052 = vst.msk [vmem:[#allocation2 + $0x48] sm:$0xf] %vm1033, %v974
        %1053 = vst.msk [vmem:[#allocation2 + $0x4c] sm:$0xf] %vm1033, %v976
        %1054 = vst.msk [vmem:[#allocation2 + $0x50] sm:$0xf] %vm1033, %v978
        %1055 = vst.msk [vmem:[#allocation2 + $0x54] sm:$0xf] %vm1033, %v980
        %1056 = vst.msk [vmem:[#allocation2 + $0x58] sm:$0xf] %vm1033, %v982
        %1057 = vst.msk [vmem:[#allocation2 + $0x5c] sm:$0xf] %vm1033, %v984
        %1058 = vst.msk [vmem:[#allocation2 + $0x60] sm:$0xf] %vm1033, %v986
        %1059 = vst.msk [vmem:[#allocation2 + $0x64] sm:$0xf] %vm1033, %v988
        %1060 = vst.msk [vmem:[#allocation2 + $0x68] sm:$0xf] %vm1033, %v990
        %1061 = vst.msk [vmem:[#allocation2 + $0x6c] sm:$0xf] %vm1033, %v992
        %1062 = vst.msk [vmem:[#allocation2 + $0x70] sm:$0xf] %vm1033, %v994
        %1063 = vst.msk [vmem:[#allocation2 + $0x74] sm:$0xf] %vm1033, %v996
        %1064 = vst.msk [vmem:[#allocation2 + $0x78] sm:$0xf] %vm1033, %v998
        %1065 = vst.msk [vmem:[#allocation2 + $0x7c] sm:$0xf] %vm1033, %v1000
        %v1066 = vld [vmem:[%s261 + $0x1] sm:$0xff]
        %v1067 = vld [vmem:[%s261 + $0x9] sm:$0xff]
        %v1068 = vld [vmem:[%s261 + $0x19] sm:$0xff]
        %v1069 = vld [vmem:[%s261 + $0x21] sm:$0xff]
        %v1070 = vld [vmem:[%s261 + $0x31] sm:$0xff]
        %v1071 = vld [vmem:[%s261 + $0x39] sm:$0xff]
        %v1072 = vld [vmem:[%s261 + $0x49] sm:$0xff]
        %v1073 = vld [vmem:[%s261 + $0x51] sm:$0xff]
        %v1074 = vld [vmem:[%s261 + $0x61] sm:$0xff]
        %v1075 = vld [vmem:[%s261 + $0x69] sm:$0xff]
        %v1076 = vld [vmem:[%s261 + $0x79] sm:$0xff]
        %v1077 = vld [vmem:[%s261 + $0x81] sm:$0xff]
        %v1078 = vld [vmem:[%s261 + $0x91] sm:$0xff]
        %v1079 = vld [vmem:[%s261 + $0x99] sm:$0xff]
        %v1080 = vld [vmem:[%s261 + $0xa9] sm:$0xff]
        %v1081 = vld [vmem:[%s261 + $0xb1] sm:$0xff]
        %v1082 = vld [vmem:[%s261 + $0xc1] sm:$0xff]
        %v1083 = vld [vmem:[%s261 + $0xc9] sm:$0xff]
        %v1084 = vld [vmem:[%s261 + $0xd9] sm:$0xff]
        %v1085 = vld [vmem:[%s261 + $0xe1] sm:$0xff]
        %v1086 = vld [vmem:[%s261 + $0xf1] sm:$0xff]
        %v1087 = vld [vmem:[%s261 + $0xf9] sm:$0xff]
        %v1088 = vld [vmem:[%s261 + $0x109] sm:$0xff]
        %v1089 = vld [vmem:[%s261 + $0x111] sm:$0xff]
        %v1090 = vld [vmem:[%s261 + $0x121] sm:$0xff]
        %v1091 = vld [vmem:[%s261 + $0x129] sm:$0xff]
        %v1092 = vld [vmem:[%s261 + $0x139] sm:$0xff]
        %v1093 = vld [vmem:[%s261 + $0x141] sm:$0xff]
        %v1094 = vld [vmem:[%s261 + $0x151] sm:$0xff]
        %v1095 = vld [vmem:[%s261 + $0x159] sm:$0xff]
        %v1096 = vld [vmem:[%s261 + $0x169] sm:$0xff]
        %v1097 = vld [vmem:[%s261 + $0x171] sm:$0xff]
        %v1098 = vpack.c.bf16 %v1066, %v1066
        %v1099 = vpack.c.bf16 %v1067, %v1067
        %v1100 = vpack.c.bf16 %v1068, %v1068
        %v1101 = vpack.c.bf16 %v1069, %v1069
        %v1102 = vpack.c.bf16 %v1070, %v1070
        %v1103 = vpack.c.bf16 %v1071, %v1071
        %v1104 = vpack.c.bf16 %v1072, %v1072
        %v1105 = vpack.c.bf16 %v1073, %v1073
        %v1106 = vpack.c.bf16 %v1074, %v1074
        %v1107 = vpack.c.bf16 %v1075, %v1075
        %v1108 = vpack.c.bf16 %v1076, %v1076
        %v1109 = vpack.c.bf16 %v1077, %v1077
        %v1110 = vpack.c.bf16 %v1078, %v1078
        %v1111 = vpack.c.bf16 %v1079, %v1079
        %v1112 = vpack.c.bf16 %v1080, %v1080
        %v1113 = vpack.c.bf16 %v1081, %v1081
        %v1114 = vpack.c.bf16 %v1082, %v1082
        %v1115 = vpack.c.bf16 %v1083, %v1083
        %v1116 = vpack.c.bf16 %v1084, %v1084
        %v1117 = vpack.c.bf16 %v1085, %v1085
        %v1118 = vpack.c.bf16 %v1086, %v1086
        %v1119 = vpack.c.bf16 %v1087, %v1087
        %v1120 = vpack.c.bf16 %v1088, %v1088
        %v1121 = vpack.c.bf16 %v1089, %v1089
        %v1122 = vpack.c.bf16 %v1090, %v1090
        %v1123 = vpack.c.bf16 %v1091, %v1091
        %v1124 = vpack.c.bf16 %v1092, %v1092
        %v1125 = vpack.c.bf16 %v1093, %v1093
        %v1126 = vpack.c.bf16 %v1094, %v1094
        %v1127 = vpack.c.bf16 %v1095, %v1095
        %v1128 = vpack.c.bf16 %v1096, %v1096
        %v1129 = vpack.c.bf16 %v1097, %v1097
        %1162 = vrot.lane.b32.xlu0 %v1098, 16
        %v1163 = vpop.permute.xlu0 %1162
        %1164 = vrot.lane.b32.xlu0 %v1099, 16
        %v1165 = vpop.permute.xlu0 %1164
        %1166 = vrot.lane.b32.xlu0 %v1100, 16
        %v1167 = vpop.permute.xlu0 %1166
        %1168 = vrot.lane.b32.xlu0 %v1101, 16
        %v1169 = vpop.permute.xlu0 %1168
        %1170 = vrot.lane.b32.xlu0 %v1102, 16
        %v1171 = vpop.permute.xlu0 %1170
        %1172 = vrot.lane.b32.xlu0 %v1103, 16
        %v1173 = vpop.permute.xlu0 %1172
        %1174 = vrot.lane.b32.xlu0 %v1104, 16
        %v1175 = vpop.permute.xlu0 %1174
        %1176 = vrot.lane.b32.xlu0 %v1105, 16
        %v1177 = vpop.permute.xlu0 %1176
        %1178 = vrot.lane.b32.xlu0 %v1106, 16
        %v1179 = vpop.permute.xlu0 %1178
        %1180 = vrot.lane.b32.xlu0 %v1107, 16
        %v1181 = vpop.permute.xlu0 %1180
        %1182 = vrot.lane.b32.xlu0 %v1108, 16
        %v1183 = vpop.permute.xlu0 %1182
        %1184 = vrot.lane.b32.xlu0 %v1109, 16
        %v1185 = vpop.permute.xlu0 %1184
        %1186 = vrot.lane.b32.xlu0 %v1110, 16
        %v1187 = vpop.permute.xlu0 %1186
        %1188 = vrot.lane.b32.xlu0 %v1111, 16
        %v1189 = vpop.permute.xlu0 %1188
        %1190 = vrot.lane.b32.xlu0 %v1112, 16
        %v1191 = vpop.permute.xlu0 %1190
        %1192 = vrot.lane.b32.xlu0 %v1113, 16
        %v1193 = vpop.permute.xlu0 %1192
        %1194 = vrot.lane.b32.xlu0 %v1114, 16
        %v1195 = vpop.permute.xlu0 %1194
        %1196 = vrot.lane.b32.xlu0 %v1115, 16
        %v1197 = vpop.permute.xlu0 %1196
        %1198 = vrot.lane.b32.xlu0 %v1116, 16
        %v1199 = vpop.permute.xlu0 %1198
        %1200 = vrot.lane.b32.xlu0 %v1117, 16
        %v1201 = vpop.permute.xlu0 %1200
        %1202 = vrot.lane.b32.xlu0 %v1118, 16
        %v1203 = vpop.permute.xlu0 %1202
        %1204 = vrot.lane.b32.xlu0 %v1119, 16
        %v1205 = vpop.permute.xlu0 %1204
        %1206 = vrot.lane.b32.xlu0 %v1120, 16
        %v1207 = vpop.permute.xlu0 %1206
        %1208 = vrot.lane.b32.xlu0 %v1121, 16
        %v1209 = vpop.permute.xlu0 %1208
        %1210 = vrot.lane.b32.xlu0 %v1122, 16
        %v1211 = vpop.permute.xlu0 %1210
        %1212 = vrot.lane.b32.xlu0 %v1123, 16
        %v1213 = vpop.permute.xlu0 %1212
        %1214 = vrot.lane.b32.xlu0 %v1124, 16
        %v1215 = vpop.permute.xlu0 %1214
        %1216 = vrot.lane.b32.xlu0 %v1125, 16
        %v1217 = vpop.permute.xlu0 %1216
        %1218 = vrot.lane.b32.xlu0 %v1126, 16
        %v1219 = vpop.permute.xlu0 %1218
        %1220 = vrot.lane.b32.xlu0 %v1127, 16
        %v1221 = vpop.permute.xlu0 %1220
        %1222 = vrot.lane.b32.xlu0 %v1128, 16
        %v1223 = vpop.permute.xlu0 %1222
        %1224 = vrot.lane.b32.xlu0 %v1129, 16
        %v1225 = vpop.permute.xlu0 %1224
        %vm1258 = vcmask 158848
        %1259 = vst.msk [vmem:[#allocation2] sm:$0xf] %vm1258, %v1163
        %1260 = vst.msk [vmem:[#allocation2 + $0x4] sm:$0xf] %vm1258, %v1165
        %1261 = vst.msk [vmem:[#allocation2 + $0x8] sm:$0xf] %vm1258, %v1167
        %1262 = vst.msk [vmem:[#allocation2 + $0xc] sm:$0xf] %vm1258, %v1169
        %1263 = vst.msk [vmem:[#allocation2 + $0x10] sm:$0xf] %vm1258, %v1171
        %1264 = vst.msk [vmem:[#allocation2 + $0x14] sm:$0xf] %vm1258, %v1173
        %1265 = vst.msk [vmem:[#allocation2 + $0x18] sm:$0xf] %vm1258, %v1175
        %1266 = vst.msk [vmem:[#allocation2 + $0x1c] sm:$0xf] %vm1258, %v1177
        %1267 = vst.msk [vmem:[#allocation2 + $0x20] sm:$0xf] %vm1258, %v1179
        %1268 = vst.msk [vmem:[#allocation2 + $0x24] sm:$0xf] %vm1258, %v1181
        %1269 = vst.msk [vmem:[#allocation2 + $0x28] sm:$0xf] %vm1258, %v1183
        %1270 = vst.msk [vmem:[#allocation2 + $0x2c] sm:$0xf] %vm1258, %v1185
        %1271 = vst.msk [vmem:[#allocation2 + $0x30] sm:$0xf] %vm1258, %v1187
        %1272 = vst.msk [vmem:[#allocation2 + $0x34] sm:$0xf] %vm1258, %v1189
        %1273 = vst.msk [vmem:[#allocation2 + $0x38] sm:$0xf] %vm1258, %v1191
        %1274 = vst.msk [vmem:[#allocation2 + $0x3c] sm:$0xf] %vm1258, %v1193
        %1275 = vst.msk [vmem:[#allocation2 + $0x40] sm:$0xf] %vm1258, %v1195
        %1276 = vst.msk [vmem:[#allocation2 + $0x44] sm:$0xf] %vm1258, %v1197
        %1277 = vst.msk [vmem:[#allocation2 + $0x48] sm:$0xf] %vm1258, %v1199
        %1278 = vst.msk [vmem:[#allocation2 + $0x4c] sm:$0xf] %vm1258, %v1201
        %1279 = vst.msk [vmem:[#allocation2 + $0x50] sm:$0xf] %vm1258, %v1203
        %1280 = vst.msk [vmem:[#allocation2 + $0x54] sm:$0xf] %vm1258, %v1205
        %1281 = vst.msk [vmem:[#allocation2 + $0x58] sm:$0xf] %vm1258, %v1207
        %1282 = vst.msk [vmem:[#allocation2 + $0x5c] sm:$0xf] %vm1258, %v1209
        %1283 = vst.msk [vmem:[#allocation2 + $0x60] sm:$0xf] %vm1258, %v1211
        %1284 = vst.msk [vmem:[#allocation2 + $0x64] sm:$0xf] %vm1258, %v1213
        %1285 = vst.msk [vmem:[#allocation2 + $0x68] sm:$0xf] %vm1258, %v1215
        %1286 = vst.msk [vmem:[#allocation2 + $0x6c] sm:$0xf] %vm1258, %v1217
        %1287 = vst.msk [vmem:[#allocation2 + $0x70] sm:$0xf] %vm1258, %v1219
        %1288 = vst.msk [vmem:[#allocation2 + $0x74] sm:$0xf] %vm1258, %v1221
        %1289 = vst.msk [vmem:[#allocation2 + $0x78] sm:$0xf] %vm1258, %v1223
        %1290 = vst.msk [vmem:[#allocation2 + $0x7c] sm:$0xf] %vm1258, %v1225
        %v1291 = vld [vmem:[%s261 + $0x2] sm:$0xff]
        %v1292 = vld [vmem:[%s261 + $0xa] sm:$0xff]
        %v1293 = vld [vmem:[%s261 + $0x1a] sm:$0xff]
        %v1294 = vld [vmem:[%s261 + $0x22] sm:$0xff]
        %v1295 = vld [vmem:[%s261 + $0x32] sm:$0xff]
        %v1296 = vld [vmem:[%s261 + $0x3a] sm:$0xff]
        %v1297 = vld [vmem:[%s261 + $0x4a] sm:$0xff]
        %v1298 = vld [vmem:[%s261 + $0x52] sm:$0xff]
        %v1299 = vld [vmem:[%s261 + $0x62] sm:$0xff]
        %v1300 = vld [vmem:[%s261 + $0x6a] sm:$0xff]
        %v1301 = vld [vmem:[%s261 + $0x7a] sm:$0xff]
        %v1302 = vld [vmem:[%s261 + $0x82] sm:$0xff]
        %v1303 = vld [vmem:[%s261 + $0x92] sm:$0xff]
        %v1304 = vld [vmem:[%s261 + $0x9a] sm:$0xff]
        %v1305 = vld [vmem:[%s261 + $0xaa] sm:$0xff]
        %v1306 = vld [vmem:[%s261 + $0xb2] sm:$0xff]
        %v1307 = vld [vmem:[%s261 + $0xc2] sm:$0xff]
        %v1308 = vld [vmem:[%s261 + $0xca] sm:$0xff]
        %v1309 = vld [vmem:[%s261 + $0xda] sm:$0xff]
        %v1310 = vld [vmem:[%s261 + $0xe2] sm:$0xff]
        %v1311 = vld [vmem:[%s261 + $0xf2] sm:$0xff]
        %v1312 = vld [vmem:[%s261 + $0xfa] sm:$0xff]
        %v1313 = vld [vmem:[%s261 + $0x10a] sm:$0xff]
        %v1314 = vld [vmem:[%s261 + $0x112] sm:$0xff]
        %v1315 = vld [vmem:[%s261 + $0x122] sm:$0xff]
        %v1316 = vld [vmem:[%s261 + $0x12a] sm:$0xff]
        %v1317 = vld [vmem:[%s261 + $0x13a] sm:$0xff]
        %v1318 = vld [vmem:[%s261 + $0x142] sm:$0xff]
        %v1319 = vld [vmem:[%s261 + $0x152] sm:$0xff]
        %v1320 = vld [vmem:[%s261 + $0x15a] sm:$0xff]
        %v1321 = vld [vmem:[%s261 + $0x16a] sm:$0xff]
        %v1322 = vld [vmem:[%s261 + $0x172] sm:$0xff]
        %v1323 = vpack.c.bf16 %v1291, %v1291
        %v1324 = vpack.c.bf16 %v1292, %v1292
        %v1325 = vpack.c.bf16 %v1293, %v1293
        %v1326 = vpack.c.bf16 %v1294, %v1294
        %v1327 = vpack.c.bf16 %v1295, %v1295
        %v1328 = vpack.c.bf16 %v1296, %v1296
        %v1329 = vpack.c.bf16 %v1297, %v1297
        %v1330 = vpack.c.bf16 %v1298, %v1298
        %v1331 = vpack.c.bf16 %v1299, %v1299
        %v1332 = vpack.c.bf16 %v1300, %v1300
        %v1333 = vpack.c.bf16 %v1301, %v1301
        %v1334 = vpack.c.bf16 %v1302, %v1302
        %v1335 = vpack.c.bf16 %v1303, %v1303
        %v1336 = vpack.c.bf16 %v1304, %v1304
        %v1337 = vpack.c.bf16 %v1305, %v1305
        %v1338 = vpack.c.bf16 %v1306, %v1306
        %v1339 = vpack.c.bf16 %v1307, %v1307
        %v1340 = vpack.c.bf16 %v1308, %v1308
        %v1341 = vpack.c.bf16 %v1309, %v1309
        %v1342 = vpack.c.bf16 %v1310, %v1310
        %v1343 = vpack.c.bf16 %v1311, %v1311
        %v1344 = vpack.c.bf16 %v1312, %v1312
        %v1345 = vpack.c.bf16 %v1313, %v1313
        %v1346 = vpack.c.bf16 %v1314, %v1314
        %v1347 = vpack.c.bf16 %v1315, %v1315
        %v1348 = vpack.c.bf16 %v1316, %v1316
        %v1349 = vpack.c.bf16 %v1317, %v1317
        %v1350 = vpack.c.bf16 %v1318, %v1318
        %v1351 = vpack.c.bf16 %v1319, %v1319
        %v1352 = vpack.c.bf16 %v1320, %v1320
        %v1353 = vpack.c.bf16 %v1321, %v1321
        %v1354 = vpack.c.bf16 %v1322, %v1322
        %1387 = vrot.lane.b32.xlu0 %v1323, 20
        %v1388 = vpop.permute.xlu0 %1387
        %1389 = vrot.lane.b32.xlu0 %v1324, 20
        %v1390 = vpop.permute.xlu0 %1389
        %1391 = vrot.lane.b32.xlu0 %v1325, 20
        %v1392 = vpop.permute.xlu0 %1391
        %1393 = vrot.lane.b32.xlu0 %v1326, 20
        %v1394 = vpop.permute.xlu0 %1393
        %1395 = vrot.lane.b32.xlu0 %v1327, 20
        %v1396 = vpop.permute.xlu0 %1395
        %1397 = vrot.lane.b32.xlu0 %v1328, 20
        %v1398 = vpop.permute.xlu0 %1397
        %1399 = vrot.lane.b32.xlu0 %v1329, 20
        %v1400 = vpop.permute.xlu0 %1399
        %1401 = vrot.lane.b32.xlu0 %v1330, 20
        %v1402 = vpop.permute.xlu0 %1401
        %1403 = vrot.lane.b32.xlu0 %v1331, 20
        %v1404 = vpop.permute.xlu0 %1403
        %1405 = vrot.lane.b32.xlu0 %v1332, 20
        %v1406 = vpop.permute.xlu0 %1405
        %1407 = vrot.lane.b32.xlu0 %v1333, 20
        %v1408 = vpop.permute.xlu0 %1407
        %1409 = vrot.lane.b32.xlu0 %v1334, 20
        %v1410 = vpop.permute.xlu0 %1409
        %1411 = vrot.lane.b32.xlu0 %v1335, 20
        %v1412 = vpop.permute.xlu0 %1411
        %1413 = vrot.lane.b32.xlu0 %v1336, 20
        %v1414 = vpop.permute.xlu0 %1413
        %1415 = vrot.lane.b32.xlu0 %v1337, 20
        %v1416 = vpop.permute.xlu0 %1415
        %1417 = vrot.lane.b32.xlu0 %v1338, 20
        %v1418 = vpop.permute.xlu0 %1417
        %1419 = vrot.lane.b32.xlu0 %v1339, 20
        %v1420 = vpop.permute.xlu0 %1419
        %1421 = vrot.lane.b32.xlu0 %v1340, 20
        %v1422 = vpop.permute.xlu0 %1421
        %1423 = vrot.lane.b32.xlu0 %v1341, 20
        %v1424 = vpop.permute.xlu0 %1423
        %1425 = vrot.lane.b32.xlu0 %v1342, 20
        %v1426 = vpop.permute.xlu0 %1425
        %1427 = vrot.lane.b32.xlu0 %v1343, 20
        %v1428 = vpop.permute.xlu0 %1427
        %1429 = vrot.lane.b32.xlu0 %v1344, 20
        %v1430 = vpop.permute.xlu0 %1429
        %1431 = vrot.lane.b32.xlu0 %v1345, 20
        %v1432 = vpop.permute.xlu0 %1431
        %1433 = vrot.lane.b32.xlu0 %v1346, 20
        %v1434 = vpop.permute.xlu0 %1433
        %1435 = vrot.lane.b32.xlu0 %v1347, 20
        %v1436 = vpop.permute.xlu0 %1435
        %1437 = vrot.lane.b32.xlu0 %v1348, 20
        %v1438 = vpop.permute.xlu0 %1437
        %1439 = vrot.lane.b32.xlu0 %v1349, 20
        %v1440 = vpop.permute.xlu0 %1439
        %1441 = vrot.lane.b32.xlu0 %v1350, 20
        %v1442 = vpop.permute.xlu0 %1441
        %1443 = vrot.lane.b32.xlu0 %v1351, 20
        %v1444 = vpop.permute.xlu0 %1443
        %1445 = vrot.lane.b32.xlu0 %v1352, 20
        %v1446 = vpop.permute.xlu0 %1445
        %1447 = vrot.lane.b32.xlu0 %v1353, 20
        %v1448 = vpop.permute.xlu0 %1447
        %1449 = vrot.lane.b32.xlu0 %v1354, 20
        %v1450 = vpop.permute.xlu0 %1449
        %vm1483 = vcmask 191648
        %1484 = vst.msk [vmem:[#allocation2] sm:$0xf] %vm1483, %v1388
        %1485 = vst.msk [vmem:[#allocation2 + $0x4] sm:$0xf] %vm1483, %v1390
        %1486 = vst.msk [vmem:[#allocation2 + $0x8] sm:$0xf] %vm1483, %v1392
        %1487 = vst.msk [vmem:[#allocation2 + $0xc] sm:$0xf] %vm1483, %v1394
        %1488 = vst.msk [vmem:[#allocation2 + $0x10] sm:$0xf] %vm1483, %v1396
        %1489 = vst.msk [vmem:[#allocation2 + $0x14] sm:$0xf] %vm1483, %v1398
        %1490 = vst.msk [vmem:[#allocation2 + $0x18] sm:$0xf] %vm1483, %v1400
        %1491 = vst.msk [vmem:[#allocation2 + $0x1c] sm:$0xf] %vm1483, %v1402
        %1492 = vst.msk [vmem:[#allocation2 + $0x20] sm:$0xf] %vm1483, %v1404
        %1493 = vst.msk [vmem:[#allocation2 + $0x24] sm:$0xf] %vm1483, %v1406
        %1494 = vst.msk [vmem:[#allocation2 + $0x28] sm:$0xf] %vm1483, %v1408
        %1495 = vst.msk [vmem:[#allocation2 + $0x2c] sm:$0xf] %vm1483, %v1410
        %1496 = vst.msk [vmem:[#allocation2 + $0x30] sm:$0xf] %vm1483, %v1412
        %1497 = vst.msk [vmem:[#allocation2 + $0x34] sm:$0xf] %vm1483, %v1414
        %1498 = vst.msk [vmem:[#allocation2 + $0x38] sm:$0xf] %vm1483, %v1416
        %1499 = vst.msk [vmem:[#allocation2 + $0x3c] sm:$0xf] %vm1483, %v1418
        %1500 = vst.msk [vmem:[#allocation2 + $0x40] sm:$0xf] %vm1483, %v1420
        %1501 = vst.msk [vmem:[#allocation2 + $0x44] sm:$0xf] %vm1483, %v1422
        %1502 = vst.msk [vmem:[#allocation2 + $0x48] sm:$0xf] %vm1483, %v1424
        %1503 = vst.msk [vmem:[#allocation2 + $0x4c] sm:$0xf] %vm1483, %v1426
        %1504 = vst.msk [vmem:[#allocation2 + $0x50] sm:$0xf] %vm1483, %v1428
        %1505 = vst.msk [vmem:[#allocation2 + $0x54] sm:$0xf] %vm1483, %v1430
        %1506 = vst.msk [vmem:[#allocation2 + $0x58] sm:$0xf] %vm1483, %v1432
        %1507 = vst.msk [vmem:[#allocation2 + $0x5c] sm:$0xf] %vm1483, %v1434
        %1508 = vst.msk [vmem:[#allocation2 + $0x60] sm:$0xf] %vm1483, %v1436
        %1509 = vst.msk [vmem:[#allocation2 + $0x64] sm:$0xf] %vm1483, %v1438
        %1510 = vst.msk [vmem:[#allocation2 + $0x68] sm:$0xf] %vm1483, %v1440
        %1511 = vst.msk [vmem:[#allocation2 + $0x6c] sm:$0xf] %vm1483, %v1442
        %1512 = vst.msk [vmem:[#allocation2 + $0x70] sm:$0xf] %vm1483, %v1444
        %1513 = vst.msk [vmem:[#allocation2 + $0x74] sm:$0xf] %vm1483, %v1446
        %1514 = vst.msk [vmem:[#allocation2 + $0x78] sm:$0xf] %vm1483, %v1448
        %1515 = vst.msk [vmem:[#allocation2 + $0x7c] sm:$0xf] %vm1483, %v1450
        %s1516 = scalar_lea.vmem [#allocation3], 48
        %v1517 = vld [vmem:[%s1516] sm:$0xff]
        %v1518 = vld [vmem:[%s1516 + $0x8] sm:$0xff]
        %v1519 = vld [vmem:[%s1516 + $0x18] sm:$0xff]
        %v1520 = vld [vmem:[%s1516 + $0x20] sm:$0xff]
        %v1521 = vld [vmem:[%s1516 + $0x30] sm:$0xff]
        %v1522 = vld [vmem:[%s1516 + $0x38] sm:$0xff]
        %v1523 = vld [vmem:[%s1516 + $0x48] sm:$0xff]
        %v1524 = vld [vmem:[%s1516 + $0x50] sm:$0xff]
        %v1525 = vld [vmem:[%s1516 + $0x60] sm:$0xff]
        %v1526 = vld [vmem:[%s1516 + $0x68] sm:$0xff]
        %v1527 = vld [vmem:[%s1516 + $0x78] sm:$0xff]
        %v1528 = vld [vmem:[%s1516 + $0x80] sm:$0xff]
        %v1529 = vld [vmem:[%s1516 + $0x90] sm:$0xff]
        %v1530 = vld [vmem:[%s1516 + $0x98] sm:$0xff]
        %v1531 = vld [vmem:[%s1516 + $0xa8] sm:$0xff]
        %v1532 = vld [vmem:[%s1516 + $0xb0] sm:$0xff]
        %v1533 = vld [vmem:[%s1516 + $0xc0] sm:$0xff]
        %v1534 = vld [vmem:[%s1516 + $0xc8] sm:$0xff]
        %v1535 = vld [vmem:[%s1516 + $0xd8] sm:$0xff]
        %v1536 = vld [vmem:[%s1516 + $0xe0] sm:$0xff]
        %v1537 = vld [vmem:[%s1516 + $0xf0] sm:$0xff]
        %v1538 = vld [vmem:[%s1516 + $0xf8] sm:$0xff]
        %v1539 = vld [vmem:[%s1516 + $0x108] sm:$0xff]
        %v1540 = vld [vmem:[%s1516 + $0x110] sm:$0xff]
        %v1541 = vld [vmem:[%s1516 + $0x120] sm:$0xff]
        %v1542 = vld [vmem:[%s1516 + $0x128] sm:$0xff]
        %v1543 = vld [vmem:[%s1516 + $0x138] sm:$0xff]
        %v1544 = vld [vmem:[%s1516 + $0x140] sm:$0xff]
        %v1545 = vld [vmem:[%s1516 + $0x150] sm:$0xff]
        %v1546 = vld [vmem:[%s1516 + $0x158] sm:$0xff]
        %v1547 = vld [vmem:[%s1516 + $0x168] sm:$0xff]
        %v1548 = vld [vmem:[%s1516 + $0x170] sm:$0xff]
        %v1549 = vpack.c.bf16 %v1517, %v1517
        %v1550 = vpack.c.bf16 %v1518, %v1518
        %v1551 = vpack.c.bf16 %v1519, %v1519
        %v1552 = vpack.c.bf16 %v1520, %v1520
        %v1553 = vpack.c.bf16 %v1521, %v1521
        %v1554 = vpack.c.bf16 %v1522, %v1522
        %v1555 = vpack.c.bf16 %v1523, %v1523
        %v1556 = vpack.c.bf16 %v1524, %v1524
        %v1557 = vpack.c.bf16 %v1525, %v1525
        %v1558 = vpack.c.bf16 %v1526, %v1526
        %v1559 = vpack.c.bf16 %v1527, %v1527
        %v1560 = vpack.c.bf16 %v1528, %v1528
        %v1561 = vpack.c.bf16 %v1529, %v1529
        %v1562 = vpack.c.bf16 %v1530, %v1530
        %v1563 = vpack.c.bf16 %v1531, %v1531
        %v1564 = vpack.c.bf16 %v1532, %v1532
        %v1565 = vpack.c.bf16 %v1533, %v1533
        %v1566 = vpack.c.bf16 %v1534, %v1534
        %v1567 = vpack.c.bf16 %v1535, %v1535
        %v1568 = vpack.c.bf16 %v1536, %v1536
        %v1569 = vpack.c.bf16 %v1537, %v1537
        %v1570 = vpack.c.bf16 %v1538, %v1538
        %v1571 = vpack.c.bf16 %v1539, %v1539
        %v1572 = vpack.c.bf16 %v1540, %v1540
        %v1573 = vpack.c.bf16 %v1541, %v1541
        %v1574 = vpack.c.bf16 %v1542, %v1542
        %v1575 = vpack.c.bf16 %v1543, %v1543
        %v1576 = vpack.c.bf16 %v1544, %v1544
        %v1577 = vpack.c.bf16 %v1545, %v1545
        %v1578 = vpack.c.bf16 %v1546, %v1546
        %v1579 = vpack.c.bf16 %v1547, %v1547
        %v1580 = vpack.c.bf16 %v1548, %v1548
        %1613 = vrot.lane.b32.xlu0 %v1549, 24
        %v1614 = vpop.permute.xlu0 %1613
        %1615 = vrot.lane.b32.xlu0 %v1550, 24
        %v1616 = vpop.permute.xlu0 %1615
        %1617 = vrot.lane.b32.xlu0 %v1551, 24
        %v1618 = vpop.permute.xlu0 %1617
        %1619 = vrot.lane.b32.xlu0 %v1552, 24
        %v1620 = vpop.permute.xlu0 %1619
        %1621 = vrot.lane.b32.xlu0 %v1553, 24
        %v1622 = vpop.permute.xlu0 %1621
        %1623 = vrot.lane.b32.xlu0 %v1554, 24
        %v1624 = vpop.permute.xlu0 %1623
        %1625 = vrot.lane.b32.xlu0 %v1555, 24
        %v1626 = vpop.permute.xlu0 %1625
        %1627 = vrot.lane.b32.xlu0 %v1556, 24
        %v1628 = vpop.permute.xlu0 %1627
        %1629 = vrot.lane.b32.xlu0 %v1557, 24
        %v1630 = vpop.permute.xlu0 %1629
        %1631 = vrot.lane.b32.xlu0 %v1558, 24
        %v1632 = vpop.permute.xlu0 %1631
        %1633 = vrot.lane.b32.xlu0 %v1559, 24
        %v1634 = vpop.permute.xlu0 %1633
        %1635 = vrot.lane.b32.xlu0 %v1560, 24
        %v1636 = vpop.permute.xlu0 %1635
        %1637 = vrot.lane.b32.xlu0 %v1561, 24
        %v1638 = vpop.permute.xlu0 %1637
        %1639 = vrot.lane.b32.xlu0 %v1562, 24
        %v1640 = vpop.permute.xlu0 %1639
        %1641 = vrot.lane.b32.xlu0 %v1563, 24
        %v1642 = vpop.permute.xlu0 %1641
        %1643 = vrot.lane.b32.xlu0 %v1564, 24
        %v1644 = vpop.permute.xlu0 %1643
        %1645 = vrot.lane.b32.xlu0 %v1565, 24
        %v1646 = vpop.permute.xlu0 %1645
        %1647 = vrot.lane.b32.xlu0 %v1566, 24
        %v1648 = vpop.permute.xlu0 %1647
        %1649 = vrot.lane.b32.xlu0 %v1567, 24
        %v1650 = vpop.permute.xlu0 %1649
        %1651 = vrot.lane.b32.xlu0 %v1568, 24
        %v1652 = vpop.permute.xlu0 %1651
        %1653 = vrot.lane.b32.xlu0 %v1569, 24
        %v1654 = vpop.permute.xlu0 %1653
        %1655 = vrot.lane.b32.xlu0 %v1570, 24
        %v1656 = vpop.permute.xlu0 %1655
        %1657 = vrot.lane.b32.xlu0 %v1571, 24
        %v1658 = vpop.permute.xlu0 %1657
        %1659 = vrot.lane.b32.xlu0 %v1572, 24
        %v1660 = vpop.permute.xlu0 %1659
        %1661 = vrot.lane.b32.xlu0 %v1573, 24
        %v1662 = vpop.permute.xlu0 %1661
        %1663 = vrot.lane.b32.xlu0 %v1574, 24
        %v1664 = vpop.permute.xlu0 %1663
        %1665 = vrot.lane.b32.xlu0 %v1575, 24
        %v1666 = vpop.permute.xlu0 %1665
        %1667 = vrot.lane.b32.xlu0 %v1576, 24
        %v1668 = vpop.permute.xlu0 %1667
        %1669 = vrot.lane.b32.xlu0 %v1577, 24
        %v1670 = vpop.permute.xlu0 %1669
        %1671 = vrot.lane.b32.xlu0 %v1578, 24
        %v1672 = vpop.permute.xlu0 %1671
        %1673 = vrot.lane.b32.xlu0 %v1579, 24
        %v1674 = vpop.permute.xlu0 %1673
        %1675 = vrot.lane.b32.xlu0 %v1580, 24
        %v1676 = vpop.permute.xlu0 %1675
        %vm1709 = vcmask 224448
        %1710 = vst.msk [vmem:[#allocation2] sm:$0xf] %vm1709, %v1614
        %1711 = vst.msk [vmem:[#allocation2 + $0x4] sm:$0xf] %vm1709, %v1616
        %1712 = vst.msk [vmem:[#allocation2 + $0x8] sm:$0xf] %vm1709, %v1618
        %1713 = vst.msk [vmem:[#allocation2 + $0xc] sm:$0xf] %vm1709, %v1620
        %1714 = vst.msk [vmem:[#allocation2 + $0x10] sm:$0xf] %vm1709, %v1622
        %1715 = vst.msk [vmem:[#allocation2 + $0x14] sm:$0xf] %vm1709, %v1624
        %1716 = vst.msk [vmem:[#allocation2 + $0x18] sm:$0xf] %vm1709, %v1626
        %1717 = vst.msk [vmem:[#allocation2 + $0x1c] sm:$0xf] %vm1709, %v1628
        %1718 = vst.msk [vmem:[#allocation2 + $0x20] sm:$0xf] %vm1709, %v1630
        %1719 = vst.msk [vmem:[#allocation2 + $0x24] sm:$0xf] %vm1709, %v1632
        %1720 = vst.msk [vmem:[#allocation2 + $0x28] sm:$0xf] %vm1709, %v1634
        %1721 = vst.msk [vmem:[#allocation2 + $0x2c] sm:$0xf] %vm1709, %v1636
        %1722 = vst.msk [vmem:[#allocation2 + $0x30] sm:$0xf] %vm1709, %v1638
        %1723 = vst.msk [vmem:[#allocation2 + $0x34] sm:$0xf] %vm1709, %v1640
        %1724 = vst.msk [vmem:[#allocation2 + $0x38] sm:$0xf] %vm1709, %v1642
        %1725 = vst.msk [vmem:[#allocation2 + $0x3c] sm:$0xf] %vm1709, %v1644
        %1726 = vst.msk [vmem:[#allocation2 + $0x40] sm:$0xf] %vm1709, %v1646
        %1727 = vst.msk [vmem:[#allocation2 + $0x44] sm:$0xf] %vm1709, %v1648
        %1728 = vst.msk [vmem:[#allocation2 + $0x48] sm:$0xf] %vm1709, %v1650
        %1729 = vst.msk [vmem:[#allocation2 + $0x4c] sm:$0xf] %vm1709, %v1652
        %1730 = vst.msk [vmem:[#allocation2 + $0x50] sm:$0xf] %vm1709, %v1654
        %1731 = vst.msk [vmem:[#allocation2 + $0x54] sm:$0xf] %vm1709, %v1656
        %1732 = vst.msk [vmem:[#allocation2 + $0x58] sm:$0xf] %vm1709, %v1658
        %1733 = vst.msk [vmem:[#allocation2 + $0x5c] sm:$0xf] %vm1709, %v1660
        %1734 = vst.msk [vmem:[#allocation2 + $0x60] sm:$0xf] %vm1709, %v1662
        %1735 = vst.msk [vmem:[#allocation2 + $0x64] sm:$0xf] %vm1709, %v1664
        %1736 = vst.msk [vmem:[#allocation2 + $0x68] sm:$0xf] %vm1709, %v1666
        %1737 = vst.msk [vmem:[#allocation2 + $0x6c] sm:$0xf] %vm1709, %v1668
        %1738 = vst.msk [vmem:[#allocation2 + $0x70] sm:$0xf] %vm1709, %v1670
        %1739 = vst.msk [vmem:[#allocation2 + $0x74] sm:$0xf] %vm1709, %v1672
        %1740 = vst.msk [vmem:[#allocation2 + $0x78] sm:$0xf] %vm1709, %v1674
        %1741 = vst.msk [vmem:[#allocation2 + $0x7c] sm:$0xf] %vm1709, %v1676
        %v1742 = vld [vmem:[%s1516 + $0x1] sm:$0xff]
        %v1743 = vld [vmem:[%s1516 + $0x9] sm:$0xff]
        %v1744 = vld [vmem:[%s1516 + $0x19] sm:$0xff]
        %v1745 = vld [vmem:[%s1516 + $0x21] sm:$0xff]
        %v1746 = vld [vmem:[%s1516 + $0x31] sm:$0xff]
        %v1747 = vld [vmem:[%s1516 + $0x39] sm:$0xff]
        %v1748 = vld [vmem:[%s1516 + $0x49] sm:$0xff]
        %v1749 = vld [vmem:[%s1516 + $0x51] sm:$0xff]
        %v1750 = vld [vmem:[%s1516 + $0x61] sm:$0xff]
        %v1751 = vld [vmem:[%s1516 + $0x69] sm:$0xff]
        %v1752 = vld [vmem:[%s1516 + $0x79] sm:$0xff]
        %v1753 = vld [vmem:[%s1516 + $0x81] sm:$0xff]
        %v1754 = vld [vmem:[%s1516 + $0x91] sm:$0xff]
        %v1755 = vld [vmem:[%s1516 + $0x99] sm:$0xff]
        %v1756 = vld [vmem:[%s1516 + $0xa9] sm:$0xff]
        %v1757 = vld [vmem:[%s1516 + $0xb1] sm:$0xff]
        %v1758 = vld [vmem:[%s1516 + $0xc1] sm:$0xff]
        %v1759 = vld [vmem:[%s1516 + $0xc9] sm:$0xff]
        %v1760 = vld [vmem:[%s1516 + $0xd9] sm:$0xff]
        %v1761 = vld [vmem:[%s1516 + $0xe1] sm:$0xff]
        %v1762 = vld [vmem:[%s1516 + $0xf1] sm:$0xff]
        %v1763 = vld [vmem:[%s1516 + $0xf9] sm:$0xff]
        %v1764 = vld [vmem:[%s1516 + $0x109] sm:$0xff]
        %v1765 = vld [vmem:[%s1516 + $0x111] sm:$0xff]
        %v1766 = vld [vmem:[%s1516 + $0x121] sm:$0xff]
        %v1767 = vld [vmem:[%s1516 + $0x129] sm:$0xff]
        %v1768 = vld [vmem:[%s1516 + $0x139] sm:$0xff]
        %v1769 = vld [vmem:[%s1516 + $0x141] sm:$0xff]
        %v1770 = vld [vmem:[%s1516 + $0x151] sm:$0xff]
        %v1771 = vld [vmem:[%s1516 + $0x159] sm:$0xff]
        %v1772 = vld [vmem:[%s1516 + $0x169] sm:$0xff]
        %v1773 = vld [vmem:[%s1516 + $0x171] sm:$0xff]
        %v1774 = vpack.c.bf16 %v1742, %v1742
        %v1775 = vpack.c.bf16 %v1743, %v1743
        %v1776 = vpack.c.bf16 %v1744, %v1744
        %v1777 = vpack.c.bf16 %v1745, %v1745
        %v1778 = vpack.c.bf16 %v1746, %v1746
        %v1779 = vpack.c.bf16 %v1747, %v1747
        %v1780 = vpack.c.bf16 %v1748, %v1748
        %v1781 = vpack.c.bf16 %v1749, %v1749
        %v1782 = vpack.c.bf16 %v1750, %v1750
        %v1783 = vpack.c.bf16 %v1751, %v1751
        %v1784 = vpack.c.bf16 %v1752, %v1752
        %v1785 = vpack.c.bf16 %v1753, %v1753
        %v1786 = vpack.c.bf16 %v1754, %v1754
        %v1787 = vpack.c.bf16 %v1755, %v1755
        %v1788 = vpack.c.bf16 %v1756, %v1756
        %v1789 = vpack.c.bf16 %v1757, %v1757
        %v1790 = vpack.c.bf16 %v1758, %v1758
        %v1791 = vpack.c.bf16 %v1759, %v1759
        %v1792 = vpack.c.bf16 %v1760, %v1760
        %v1793 = vpack.c.bf16 %v1761, %v1761
        %v1794 = vpack.c.bf16 %v1762, %v1762
        %v1795 = vpack.c.bf16 %v1763, %v1763
        %v1796 = vpack.c.bf16 %v1764, %v1764
        %v1797 = vpack.c.bf16 %v1765, %v1765
        %v1798 = vpack.c.bf16 %v1766, %v1766
        %v1799 = vpack.c.bf16 %v1767, %v1767
        %v1800 = vpack.c.bf16 %v1768, %v1768
        %v1801 = vpack.c.bf16 %v1769, %v1769
        %v1802 = vpack.c.bf16 %v1770, %v1770
        %v1803 = vpack.c.bf16 %v1771, %v1771
        %v1804 = vpack.c.bf16 %v1772, %v1772
        %v1805 = vpack.c.bf16 %v1773, %v1773
        %1838 = vrot.lane.b32.xlu0 %v1774, 28
        %v1839 = vpop.permute.xlu0 %1838
        %1840 = vrot.lane.b32.xlu0 %v1775, 28
        %v1841 = vpop.permute.xlu0 %1840
        %1842 = vrot.lane.b32.xlu0 %v1776, 28
        %v1843 = vpop.permute.xlu0 %1842
        %1844 = vrot.lane.b32.xlu0 %v1777, 28
        %v1845 = vpop.permute.xlu0 %1844
        %1846 = vrot.lane.b32.xlu0 %v1778, 28
        %v1847 = vpop.permute.xlu0 %1846
        %1848 = vrot.lane.b32.xlu0 %v1779, 28
        %v1849 = vpop.permute.xlu0 %1848
        %1850 = vrot.lane.b32.xlu0 %v1780, 28
        %v1851 = vpop.permute.xlu0 %1850
        %1852 = vrot.lane.b32.xlu0 %v1781, 28
        %v1853 = vpop.permute.xlu0 %1852
        %1854 = vrot.lane.b32.xlu0 %v1782, 28
        %v1855 = vpop.permute.xlu0 %1854
        %1856 = vrot.lane.b32.xlu0 %v1783, 28
        %v1857 = vpop.permute.xlu0 %1856
        %1858 = vrot.lane.b32.xlu0 %v1784, 28
        %v1859 = vpop.permute.xlu0 %1858
        %1860 = vrot.lane.b32.xlu0 %v1785, 28
        %v1861 = vpop.permute.xlu0 %1860
        %1862 = vrot.lane.b32.xlu0 %v1786, 28
        %v1863 = vpop.permute.xlu0 %1862
        %1864 = vrot.lane.b32.xlu0 %v1787, 28
        %v1865 = vpop.permute.xlu0 %1864
        %1866 = vrot.lane.b32.xlu0 %v1788, 28
        %v1867 = vpop.permute.xlu0 %1866
        %1868 = vrot.lane.b32.xlu0 %v1789, 28
        %v1869 = vpop.permute.xlu0 %1868
        %1870 = vrot.lane.b32.xlu0 %v1790, 28
        %v1871 = vpop.permute.xlu0 %1870
        %1872 = vrot.lane.b32.xlu0 %v1791, 28
        %v1873 = vpop.permute.xlu0 %1872
        %1874 = vrot.lane.b32.xlu0 %v1792, 28
        %v1875 = vpop.permute.xlu0 %1874
        %1876 = vrot.lane.b32.xlu0 %v1793, 28
        %v1877 = vpop.permute.xlu0 %1876
        %1878 = vrot.lane.b32.xlu0 %v1794, 28
        %v1879 = vpop.permute.xlu0 %1878
        %1880 = vrot.lane.b32.xlu0 %v1795, 28
        %v1881 = vpop.permute.xlu0 %1880
        %1882 = vrot.lane.b32.xlu0 %v1796, 28
        %v1883 = vpop.permute.xlu0 %1882
        %1884 = vrot.lane.b32.xlu0 %v1797, 28
        %v1885 = vpop.permute.xlu0 %1884
        %1886 = vrot.lane.b32.xlu0 %v1798, 28
        %v1887 = vpop.permute.xlu0 %1886
        %1888 = vrot.lane.b32.xlu0 %v1799, 28
        %v1889 = vpop.permute.xlu0 %1888
        %1890 = vrot.lane.b32.xlu0 %v1800, 28
        %v1891 = vpop.permute.xlu0 %1890
        %1892 = vrot.lane.b32.xlu0 %v1801, 28
        %v1893 = vpop.permute.xlu0 %1892
        %1894 = vrot.lane.b32.xlu0 %v1802, 28
        %v1895 = vpop.permute.xlu0 %1894
        %1896 = vrot.lane.b32.xlu0 %v1803, 28
        %v1897 = vpop.permute.xlu0 %1896
        %1898 = vrot.lane.b32.xlu0 %v1804, 28
        %v1899 = vpop.permute.xlu0 %1898
        %1900 = vrot.lane.b32.xlu0 %v1805, 28
        %v1901 = vpop.permute.xlu0 %1900
        %vm1934 = vcmask 257248
        %1935 = vst.msk [vmem:[#allocation2] sm:$0xf] %vm1934, %v1839
        %1936 = vst.msk [vmem:[#allocation2 + $0x4] sm:$0xf] %vm1934, %v1841
        %1937 = vst.msk [vmem:[#allocation2 + $0x8] sm:$0xf] %vm1934, %v1843
        %1938 = vst.msk [vmem:[#allocation2 + $0xc] sm:$0xf] %vm1934, %v1845
        %1939 = vst.msk [vmem:[#allocation2 + $0x10] sm:$0xf] %vm1934, %v1847
        %1940 = vst.msk [vmem:[#allocation2 + $0x14] sm:$0xf] %vm1934, %v1849
        %1941 = vst.msk [vmem:[#allocation2 + $0x18] sm:$0xf] %vm1934, %v1851
        %1942 = vst.msk [vmem:[#allocation2 + $0x1c] sm:$0xf] %vm1934, %v1853
        %1943 = vst.msk [vmem:[#allocation2 + $0x20] sm:$0xf] %vm1934, %v1855
        %1944 = vst.msk [vmem:[#allocation2 + $0x24] sm:$0xf] %vm1934, %v1857
        %1945 = vst.msk [vmem:[#allocation2 + $0x28] sm:$0xf] %vm1934, %v1859
        %1946 = vst.msk [vmem:[#allocation2 + $0x2c] sm:$0xf] %vm1934, %v1861
        %1947 = vst.msk [vmem:[#allocation2 + $0x30] sm:$0xf] %vm1934, %v1863
        %1948 = vst.msk [vmem:[#allocation2 + $0x34] sm:$0xf] %vm1934, %v1865
        %1949 = vst.msk [vmem:[#allocation2 + $0x38] sm:$0xf] %vm1934, %v1867
        %1950 = vst.msk [vmem:[#allocation2 + $0x3c] sm:$0xf] %vm1934, %v1869
        %1951 = vst.msk [vmem:[#allocation2 + $0x40] sm:$0xf] %vm1934, %v1871
        %1952 = vst.msk [vmem:[#allocation2 + $0x44] sm:$0xf] %vm1934, %v1873
        %1953 = vst.msk [vmem:[#allocation2 + $0x48] sm:$0xf] %vm1934, %v1875
        %1954 = vst.msk [vmem:[#allocation2 + $0x4c] sm:$0xf] %vm1934, %v1877
        %1955 = vst.msk [vmem:[#allocation2 + $0x50] sm:$0xf] %vm1934, %v1879
        %1956 = vst.msk [vmem:[#allocation2 + $0x54] sm:$0xf] %vm1934, %v1881
        %1957 = vst.msk [vmem:[#allocation2 + $0x58] sm:$0xf] %vm1934, %v1883
        %1958 = vst.msk [vmem:[#allocation2 + $0x5c] sm:$0xf] %vm1934, %v1885
        %1959 = vst.msk [vmem:[#allocation2 + $0x60] sm:$0xf] %vm1934, %v1887
        %1960 = vst.msk [vmem:[#allocation2 + $0x64] sm:$0xf] %vm1934, %v1889
        %1961 = vst.msk [vmem:[#allocation2 + $0x68] sm:$0xf] %vm1934, %v1891
        %1962 = vst.msk [vmem:[#allocation2 + $0x6c] sm:$0xf] %vm1934, %v1893
        %1963 = vst.msk [vmem:[#allocation2 + $0x70] sm:$0xf] %vm1934, %v1895
        %1964 = vst.msk [vmem:[#allocation2 + $0x74] sm:$0xf] %vm1934, %v1897
        %1965 = vst.msk [vmem:[#allocation2 + $0x78] sm:$0xf] %vm1934, %v1899
        %1966 = vst.msk [vmem:[#allocation2 + $0x7c] sm:$0xf] %vm1934, %v1901
        %v1967 = vld [vmem:[%s1516 + $0x2] sm:$0xff]
        %v1968 = vld [vmem:[%s1516 + $0xa] sm:$0xff]
        %v1969 = vld [vmem:[%s1516 + $0x1a] sm:$0xff]
        %v1970 = vld [vmem:[%s1516 + $0x22] sm:$0xff]
        %v1971 = vld [vmem:[%s1516 + $0x32] sm:$0xff]
        %v1972 = vld [vmem:[%s1516 + $0x3a] sm:$0xff]
        %v1973 = vld [vmem:[%s1516 + $0x4a] sm:$0xff]
        %v1974 = vld [vmem:[%s1516 + $0x52] sm:$0xff]
        %v1975 = vld [vmem:[%s1516 + $0x62] sm:$0xff]
        %v1976 = vld [vmem:[%s1516 + $0x6a] sm:$0xff]
        %v1977 = vld [vmem:[%s1516 + $0x7a] sm:$0xff]
        %v1978 = vld [vmem:[%s1516 + $0x82] sm:$0xff]
        %v1979 = vld [vmem:[%s1516 + $0x92] sm:$0xff]
        %v1980 = vld [vmem:[%s1516 + $0x9a] sm:$0xff]
        %v1981 = vld [vmem:[%s1516 + $0xaa] sm:$0xff]
        %v1982 = vld [vmem:[%s1516 + $0xb2] sm:$0xff]
        %v1983 = vld [vmem:[%s1516 + $0xc2] sm:$0xff]
        %v1984 = vld [vmem:[%s1516 + $0xca] sm:$0xff]
        %v1985 = vld [vmem:[%s1516 + $0xda] sm:$0xff]
        %v1986 = vld [vmem:[%s1516 + $0xe2] sm:$0xff]
        %v1987 = vld [vmem:[%s1516 + $0xf2] sm:$0xff]
        %v1988 = vld [vmem:[%s1516 + $0xfa] sm:$0xff]
        %v1989 = vld [vmem:[%s1516 + $0x10a] sm:$0xff]
        %v1990 = vld [vmem:[%s1516 + $0x112] sm:$0xff]
        %v1991 = vld [vmem:[%s1516 + $0x122] sm:$0xff]
        %v1992 = vld [vmem:[%s1516 + $0x12a] sm:$0xff]
        %v1993 = vld [vmem:[%s1516 + $0x13a] sm:$0xff]
        %v1994 = vld [vmem:[%s1516 + $0x142] sm:$0xff]
        %v1995 = vld [vmem:[%s1516 + $0x152] sm:$0xff]
        %v1996 = vld [vmem:[%s1516 + $0x15a] sm:$0xff]
        %v1997 = vld [vmem:[%s1516 + $0x16a] sm:$0xff]
        %v1998 = vld [vmem:[%s1516 + $0x172] sm:$0xff]
        %v1999 = vpack.c.bf16 %v1967, %v1967
        %v2000 = vpack.c.bf16 %v1968, %v1968
        %v2001 = vpack.c.bf16 %v1969, %v1969
        %v2002 = vpack.c.bf16 %v1970, %v1970
        %v2003 = vpack.c.bf16 %v1971, %v1971
        %v2004 = vpack.c.bf16 %v1972, %v1972
        %v2005 = vpack.c.bf16 %v1973, %v1973
        %v2006 = vpack.c.bf16 %v1974, %v1974
        %v2007 = vpack.c.bf16 %v1975, %v1975
        %v2008 = vpack.c.bf16 %v1976, %v1976
        %v2009 = vpack.c.bf16 %v1977, %v1977
        %v2010 = vpack.c.bf16 %v1978, %v1978
        %v2011 = vpack.c.bf16 %v1979, %v1979
        %v2012 = vpack.c.bf16 %v1980, %v1980
        %v2013 = vpack.c.bf16 %v1981, %v1981
        %v2014 = vpack.c.bf16 %v1982, %v1982
        %v2015 = vpack.c.bf16 %v1983, %v1983
        %v2016 = vpack.c.bf16 %v1984, %v1984
        %v2017 = vpack.c.bf16 %v1985, %v1985
        %v2018 = vpack.c.bf16 %v1986, %v1986
        %v2019 = vpack.c.bf16 %v1987, %v1987
        %v2020 = vpack.c.bf16 %v1988, %v1988
        %v2021 = vpack.c.bf16 %v1989, %v1989
        %v2022 = vpack.c.bf16 %v1990, %v1990
        %v2023 = vpack.c.bf16 %v1991, %v1991
        %v2024 = vpack.c.bf16 %v1992, %v1992
        %v2025 = vpack.c.bf16 %v1993, %v1993
        %v2026 = vpack.c.bf16 %v1994, %v1994
        %v2027 = vpack.c.bf16 %v1995, %v1995
        %v2028 = vpack.c.bf16 %v1996, %v1996
        %v2029 = vpack.c.bf16 %v1997, %v1997
        %v2030 = vpack.c.bf16 %v1998, %v1998
        %2063 = vrot.lane.b32.xlu0 %v1999, 32
        %v2064 = vpop.permute.xlu0 %2063
        %2065 = vrot.lane.b32.xlu0 %v2000, 32
        %v2066 = vpop.permute.xlu0 %2065
        %2067 = vrot.lane.b32.xlu0 %v2001, 32
        %v2068 = vpop.permute.xlu0 %2067
        %2069 = vrot.lane.b32.xlu0 %v2002, 32
        %v2070 = vpop.permute.xlu0 %2069
        %2071 = vrot.lane.b32.xlu0 %v2003, 32
        %v2072 = vpop.permute.xlu0 %2071
        %2073 = vrot.lane.b32.xlu0 %v2004, 32
        %v2074 = vpop.permute.xlu0 %2073
        %2075 = vrot.lane.b32.xlu0 %v2005, 32
        %v2076 = vpop.permute.xlu0 %2075
        %2077 = vrot.lane.b32.xlu0 %v2006, 32
        %v2078 = vpop.permute.xlu0 %2077
        %2079 = vrot.lane.b32.xlu0 %v2007, 32
        %v2080 = vpop.permute.xlu0 %2079
        %2081 = vrot.lane.b32.xlu0 %v2008, 32
        %v2082 = vpop.permute.xlu0 %2081
        %2083 = vrot.lane.b32.xlu0 %v2009, 32
        %v2084 = vpop.permute.xlu0 %2083
        %2085 = vrot.lane.b32.xlu0 %v2010, 32
        %v2086 = vpop.permute.xlu0 %2085
        %2087 = vrot.lane.b32.xlu0 %v2011, 32
        %v2088 = vpop.permute.xlu0 %2087
        %2089 = vrot.lane.b32.xlu0 %v2012, 32
        %v2090 = vpop.permute.xlu0 %2089
        %2091 = vrot.lane.b32.xlu0 %v2013, 32
        %v2092 = vpop.permute.xlu0 %2091
        %2093 = vrot.lane.b32.xlu0 %v2014, 32
        %v2094 = vpop.permute.xlu0 %2093
        %2095 = vrot.lane.b32.xlu0 %v2015, 32
        %v2096 = vpop.permute.xlu0 %2095
        %2097 = vrot.lane.b32.xlu0 %v2016, 32
        %v2098 = vpop.permute.xlu0 %2097
        %2099 = vrot.lane.b32.xlu0 %v2017, 32
        %v2100 = vpop.permute.xlu0 %2099
        %2101 = vrot.lane.b32.xlu0 %v2018, 32
        %v2102 = vpop.permute.xlu0 %2101
        %2103 = vrot.lane.b32.xlu0 %v2019, 32
        %v2104 = vpop.permute.xlu0 %2103
        %2105 = vrot.lane.b32.xlu0 %v2020, 32
        %v2106 = vpop.permute.xlu0 %2105
        %2107 = vrot.lane.b32.xlu0 %v2021, 32
        %v2108 = vpop.permute.xlu0 %2107
        %2109 = vrot.lane.b32.xlu0 %v2022, 32
        %v2110 = vpop.permute.xlu0 %2109
        %2111 = vrot.lane.b32.xlu0 %v2023, 32
        %v2112 = vpop.permute.xlu0 %2111
        %2113 = vrot.lane.b32.xlu0 %v2024, 32
        %v2114 = vpop.permute.xlu0 %2113
        %2115 = vrot.lane.b32.xlu0 %v2025, 32
        %v2116 = vpop.permute.xlu0 %2115
        %2117 = vrot.lane.b32.xlu0 %v2026, 32
        %v2118 = vpop.permute.xlu0 %2117
        %2119 = vrot.lane.b32.xlu0 %v2027, 32
        %v2120 = vpop.permute.xlu0 %2119
        %2121 = vrot.lane.b32.xlu0 %v2028, 32
        %v2122 = vpop.permute.xlu0 %2121
        %2123 = vrot.lane.b32.xlu0 %v2029, 32
        %v2124 = vpop.permute.xlu0 %2123
        %2125 = vrot.lane.b32.xlu0 %v2030, 32
        %v2126 = vpop.permute.xlu0 %2125
        %vm2159 = vcmask 290048
        %2160 = vst.msk [vmem:[#allocation2] sm:$0xf] %vm2159, %v2064
        %2161 = vst.msk [vmem:[#allocation2 + $0x4] sm:$0xf] %vm2159, %v2066
        %2162 = vst.msk [vmem:[#allocation2 + $0x8] sm:$0xf] %vm2159, %v2068
        %2163 = vst.msk [vmem:[#allocation2 + $0xc] sm:$0xf] %vm2159, %v2070
        %2164 = vst.msk [vmem:[#allocation2 + $0x10] sm:$0xf] %vm2159, %v2072
        %2165 = vst.msk [vmem:[#allocation2 + $0x14] sm:$0xf] %vm2159, %v2074
        %2166 = vst.msk [vmem:[#allocation2 + $0x18] sm:$0xf] %vm2159, %v2076
        %2167 = vst.msk [vmem:[#allocation2 + $0x1c] sm:$0xf] %vm2159, %v2078
        %2168 = vst.msk [vmem:[#allocation2 + $0x20] sm:$0xf] %vm2159, %v2080
        %2169 = vst.msk [vmem:[#allocation2 + $0x24] sm:$0xf] %vm2159, %v2082
        %2170 = vst.msk [vmem:[#allocation2 + $0x28] sm:$0xf] %vm2159, %v2084
        %2171 = vst.msk [vmem:[#allocation2 + $0x2c] sm:$0xf] %vm2159, %v2086
        %2172 = vst.msk [vmem:[#allocation2 + $0x30] sm:$0xf] %vm2159, %v2088
        %2173 = vst.msk [vmem:[#allocation2 + $0x34] sm:$0xf] %vm2159, %v2090
        %2174 = vst.msk [vmem:[#allocation2 + $0x38] sm:$0xf] %vm2159, %v2092
        %2175 = vst.msk [vmem:[#allocation2 + $0x3c] sm:$0xf] %vm2159, %v2094
        %2176 = vst.msk [vmem:[#allocation2 + $0x40] sm:$0xf] %vm2159, %v2096
        %2177 = vst.msk [vmem:[#allocation2 + $0x44] sm:$0xf] %vm2159, %v2098
        %2178 = vst.msk [vmem:[#allocation2 + $0x48] sm:$0xf] %vm2159, %v2100
        %2179 = vst.msk [vmem:[#allocation2 + $0x4c] sm:$0xf] %vm2159, %v2102
        %2180 = vst.msk [vmem:[#allocation2 + $0x50] sm:$0xf] %vm2159, %v2104
        %2181 = vst.msk [vmem:[#allocation2 + $0x54] sm:$0xf] %vm2159, %v2106
        %2182 = vst.msk [vmem:[#allocation2 + $0x58] sm:$0xf] %vm2159, %v2108
        %2183 = vst.msk [vmem:[#allocation2 + $0x5c] sm:$0xf] %vm2159, %v2110
        %2184 = vst.msk [vmem:[#allocation2 + $0x60] sm:$0xf] %vm2159, %v2112
        %2185 = vst.msk [vmem:[#allocation2 + $0x64] sm:$0xf] %vm2159, %v2114
        %2186 = vst.msk [vmem:[#allocation2 + $0x68] sm:$0xf] %vm2159, %v2116
        %2187 = vst.msk [vmem:[#allocation2 + $0x6c] sm:$0xf] %vm2159, %v2118
        %2188 = vst.msk [vmem:[#allocation2 + $0x70] sm:$0xf] %vm2159, %v2120
        %2189 = vst.msk [vmem:[#allocation2 + $0x74] sm:$0xf] %vm2159, %v2122
        %2190 = vst.msk [vmem:[#allocation2 + $0x78] sm:$0xf] %vm2159, %v2124
        %2191 = vst.msk [vmem:[#allocation2 + $0x7c] sm:$0xf] %vm2159, %v2126
        %v2192 = vld [vmem:[#allocation2] sm:$0xf]
        %v2193 = vld [vmem:[#allocation2 + $0x4] sm:$0xf]
        %v2194 = vld [vmem:[#allocation2 + $0x8] sm:$0xf]
        %v2195 = vld [vmem:[#allocation2 + $0xc] sm:$0xf]
        %v2196 = vld [vmem:[#allocation2 + $0x10] sm:$0xf]
        %v2197 = vld [vmem:[#allocation2 + $0x14] sm:$0xf]
        %v2198 = vld [vmem:[#allocation2 + $0x18] sm:$0xf]
        %v2199 = vld [vmem:[#allocation2 + $0x1c] sm:$0xf]
        %v2200 = vld [vmem:[#allocation2 + $0x20] sm:$0xf]
        %v2201 = vld [vmem:[#allocation2 + $0x24] sm:$0xf]
        %v2202 = vld [vmem:[#allocation2 + $0x28] sm:$0xf]
        %v2203 = vld [vmem:[#allocation2 + $0x2c] sm:$0xf]
        %v2204 = vld [vmem:[#allocation2 + $0x30] sm:$0xf]
        %v2205 = vld [vmem:[#allocation2 + $0x34] sm:$0xf]
        %v2206 = vld [vmem:[#allocation2 + $0x38] sm:$0xf]
        %v2207 = vld [vmem:[#allocation2 + $0x3c] sm:$0xf]
        %v2208 = vld [vmem:[#allocation2 + $0x40] sm:$0xf]
        %v2209 = vld [vmem:[#allocation2 + $0x44] sm:$0xf]
        %v2210 = vld [vmem:[#allocation2 + $0x48] sm:$0xf]
        %v2211 = vld [vmem:[#allocation2 + $0x4c] sm:$0xf]
        %v2212 = vld [vmem:[#allocation2 + $0x50] sm:$0xf]
        %v2213 = vld [vmem:[#allocation2 + $0x54] sm:$0xf]
        %v2214 = vld [vmem:[#allocation2 + $0x58] sm:$0xf]
        %v2215 = vld [vmem:[#allocation2 + $0x5c] sm:$0xf]
        %v2216 = vld [vmem:[#allocation2 + $0x60] sm:$0xf]
        %v2217 = vld [vmem:[#allocation2 + $0x64] sm:$0xf]
        %v2218 = vld [vmem:[#allocation2 + $0x68] sm:$0xf]
        %v2219 = vld [vmem:[#allocation2 + $0x6c] sm:$0xf]
        %v2220 = vld [vmem:[#allocation2 + $0x70] sm:$0xf]
        %v2221 = vld [vmem:[#allocation2 + $0x74] sm:$0xf]
        %v2222 = vld [vmem:[#allocation2 + $0x78] sm:$0xf]
        %v2223 = vld [vmem:[#allocation2 + $0x7c] sm:$0xf]
        %v2224 = vld [vmem:[%s1] sm:$0xf]
        %v2225 = vld [vmem:[%s1 + $0x4] sm:$0xf]
        %v2226 = vld [vmem:[%s1 + $0x8] sm:$0xf]
        %v2227 = vld [vmem:[%s1 + $0xc] sm:$0xf]
        %v2228 = vld [vmem:[%s1 + $0x10] sm:$0x3]
        %v2261 = vunpack.c.l.b16 %v2192
        %v2262 = vunpack.c.l.b16 %v2193
        %v2263 = vunpack.c.l.b16 %v2194
        %v2264 = vunpack.c.l.b16 %v2195
        %v2265 = vunpack.c.l.b16 %v2196
        %v2266 = vunpack.c.l.b16 %v2197
        %v2267 = vunpack.c.l.b16 %v2198
        %v2268 = vunpack.c.l.b16 %v2199
        %v2269 = vunpack.c.l.b16 %v2200
        %v2270 = vunpack.c.l.b16 %v2201
        %v2271 = vunpack.c.l.b16 %v2202
        %v2272 = vunpack.c.l.b16 %v2203
        %v2273 = vunpack.c.l.b16 %v2204
        %v2274 = vunpack.c.l.b16 %v2205
        %v2275 = vunpack.c.l.b16 %v2206
        %v2276 = vunpack.c.l.b16 %v2207
        %v2277 = vunpack.c.l.b16 %v2208
        %v2278 = vunpack.c.l.b16 %v2209
        %v2279 = vunpack.c.l.b16 %v2210
        %v2280 = vunpack.c.l.b16 %v2211
        %v2281 = vunpack.c.l.b16 %v2212
        %v2282 = vunpack.c.l.b16 %v2213
        %v2283 = vunpack.c.l.b16 %v2214
        %v2284 = vunpack.c.l.b16 %v2215
        %v2285 = vunpack.c.l.b16 %v2216
        %v2286 = vunpack.c.l.b16 %v2217
        %v2287 = vunpack.c.l.b16 %v2218
        %v2288 = vunpack.c.l.b16 %v2219
        %v2289 = vunpack.c.l.b16 %v2220
        %v2290 = vunpack.c.l.b16 %v2221
        %v2291 = vunpack.c.l.b16 %v2222
        %v2292 = vunpack.c.l.b16 %v2223
        %v2293 = vpack.c.b16 %v2262, %v2261
        %v2294 = vpack.c.b16 %v2264, %v2263
        %v2295 = vpack.c.b16 %v2266, %v2265
        %v2296 = vpack.c.b16 %v2268, %v2267
        %v2297 = vpack.c.b16 %v2270, %v2269
        %v2298 = vpack.c.b16 %v2272, %v2271
        %v2299 = vpack.c.b16 %v2274, %v2273
        %v2300 = vpack.c.b16 %v2276, %v2275
        %v2301 = vpack.c.b16 %v2278, %v2277
        %v2302 = vpack.c.b16 %v2280, %v2279
        %v2303 = vpack.c.b16 %v2282, %v2281
        %v2304 = vpack.c.b16 %v2284, %v2283
        %v2305 = vpack.c.b16 %v2286, %v2285
        %v2306 = vpack.c.b16 %v2288, %v2287
        %v2307 = vpack.c.b16 %v2290, %v2289
        %v2308 = vpack.c.b16 %v2292, %v2291
        %v2314 = vunpack.c.l.b16 %v2224
        %v2315 = vunpack.c.l.b16 %v2225
        %v2316 = vunpack.c.l.b16 %v2226
        %v2317 = vunpack.c.l.b16 %v2227
        %v2318 = vunpack.c.l.b16 %v2228
        %v2319 = vpack.c.b16 %v2315, %v2314
        %v2320 = vpack.c.b16 %v2317, %v2316
        %v2321 = vpack.c.b16 %v2318, %v2318
        %vm2324 = vcmask 293888
        %v2326 = vsel %vm2324, %v2293, 0
        %v2329 = vsel %vm2324, %v2294, 0
        %v2332 = vsel %vm2324, %v2295, 0
        %v2335 = vsel %vm2324, %v2296, 0
        %v2338 = vsel %vm2324, %v2297, 0
        %v2341 = vsel %vm2324, %v2298, 0
        %v2344 = vsel %vm2324, %v2299, 0
        %v2347 = vsel %vm2324, %v2300, 0
        %v2350 = vsel %vm2324, %v2301, 0
        %v2353 = vsel %vm2324, %v2302, 0
        %v2356 = vsel %vm2324, %v2303, 0
        %v2359 = vsel %vm2324, %v2304, 0
        %v2362 = vsel %vm2324, %v2305, 0
        %v2365 = vsel %vm2324, %v2306, 0
        %v2368 = vsel %vm2324, %v2307, 0
        %v2371 = vsel %vm2324, %v2308, 0
        %vm2373 = vcmask 1041408
        %v2375 = vsel %vm2373, %v2321, 0
        %2377 = vmatpush.bf16.msra.mxu0 0
        %2378 = vmatpush.bf16.msra.mxu0 0
        %2379 = vmatpush.bf16.msra.mxu0 0
        %2380 = vmatpush.bf16.msra.mxu0 0
        %2381 = vmatpush.bf16.msra.mxu0 0
        %2382 = vmatpush.bf16.msra.mxu0 %v2375
        %2383 = vmatpush.bf16.msra.mxu0 %v2320
        %2384 = vmatpush.bf16.msra.mxu0 %v2319
        %2385 = vmatmul.bf16.gmra.mxu0 %v2326
        %v2386 = vpop.f32.mrf.mxu0
        %v2387 = vadd.f32 0.0, %v2386
        %v2388 = vpop.f32.mrf.mxu0
        %v2389 = vadd.f32 0.0, %v2388
        %2390 = vmatmul.bf16.gmra.mxu0 %v2329
        %v2391 = vpop.f32.mrf.mxu0
        %v2392 = vadd.f32 0.0, %v2391
        %v2393 = vpop.f32.mrf.mxu0
        %v2394 = vadd.f32 0.0, %v2393
        %2395 = vmatmul.bf16.gmra.mxu0 %v2332
        %v2396 = vpop.f32.mrf.mxu0
        %v2397 = vadd.f32 0.0, %v2396
        %v2398 = vpop.f32.mrf.mxu0
        %v2399 = vadd.f32 0.0, %v2398
        %2400 = vmatmul.bf16.gmra.mxu0 %v2335
        %v2401 = vpop.f32.mrf.mxu0
        %v2402 = vadd.f32 0.0, %v2401
        %v2403 = vpop.f32.mrf.mxu0
        %v2404 = vadd.f32 0.0, %v2403
        %2405 = vmatmul.bf16.gmra.mxu0 %v2338
        %v2406 = vpop.f32.mrf.mxu0
        %v2407 = vadd.f32 0.0, %v2406
        %v2408 = vpop.f32.mrf.mxu0
        %v2409 = vadd.f32 0.0, %v2408
        %2410 = vmatmul.bf16.gmra.mxu0 %v2341
        %v2411 = vpop.f32.mrf.mxu0
        %v2412 = vadd.f32 0.0, %v2411
        %v2413 = vpop.f32.mrf.mxu0
        %v2414 = vadd.f32 0.0, %v2413
        %2415 = vmatmul.bf16.gmra.mxu0 %v2344
        %v2416 = vpop.f32.mrf.mxu0
        %v2417 = vadd.f32 0.0, %v2416
        %v2418 = vpop.f32.mrf.mxu0
        %v2419 = vadd.f32 0.0, %v2418
        %2420 = vmatmul.bf16.gmra.mxu0 %v2347
        %v2421 = vpop.f32.mrf.mxu0
        %v2422 = vadd.f32 0.0, %v2421
        %v2423 = vpop.f32.mrf.mxu0
        %v2424 = vadd.f32 0.0, %v2423
        %2425 = vmatmul.bf16.gmra.mxu0 %v2350
        %v2426 = vpop.f32.mrf.mxu0
        %v2427 = vadd.f32 0.0, %v2426
        %v2428 = vpop.f32.mrf.mxu0
        %v2429 = vadd.f32 0.0, %v2428
        %2430 = vmatmul.bf16.gmra.mxu0 %v2353
        %v2431 = vpop.f32.mrf.mxu0
        %v2432 = vadd.f32 0.0, %v2431
        %v2433 = vpop.f32.mrf.mxu0
        %v2434 = vadd.f32 0.0, %v2433
        %2435 = vmatmul.bf16.gmra.mxu0 %v2356
        %v2436 = vpop.f32.mrf.mxu0
        %v2437 = vadd.f32 0.0, %v2436
        %v2438 = vpop.f32.mrf.mxu0
        %v2439 = vadd.f32 0.0, %v2438
        %2440 = vmatmul.bf16.gmra.mxu0 %v2359
        %v2441 = vpop.f32.mrf.mxu0
        %v2442 = vadd.f32 0.0, %v2441
        %v2443 = vpop.f32.mrf.mxu0
        %v2444 = vadd.f32 0.0, %v2443
        %2445 = vmatmul.bf16.gmra.mxu0 %v2362
        %v2446 = vpop.f32.mrf.mxu0
        %v2447 = vadd.f32 0.0, %v2446
        %v2448 = vpop.f32.mrf.mxu0
        %v2449 = vadd.f32 0.0, %v2448
        %2450 = vmatmul.bf16.gmra.mxu0 %v2365
        %v2451 = vpop.f32.mrf.mxu0
        %v2452 = vadd.f32 0.0, %v2451
        %v2453 = vpop.f32.mrf.mxu0
        %v2454 = vadd.f32 0.0, %v2453
        %2455 = vmatmul.bf16.gmra.mxu0 %v2368
        %v2456 = vpop.f32.mrf.mxu0
        %v2457 = vadd.f32 0.0, %v2456
        %v2458 = vpop.f32.mrf.mxu0
        %v2459 = vadd.f32 0.0, %v2458
        %2460 = vmatmul.bf16.gmra.mxu0 %v2371
        %v2461 = vpop.f32.mrf.mxu0
        %v2462 = vadd.f32 0.0, %v2461
        %v2463 = vpop.f32.mrf.mxu0
        %v2464 = vadd.f32 0.0, %v2463
        %2465 = vdwg.mxu0
        %vm2466 = vcmask 64512
        %v2467 = vsel %vm2466, %v2387, 0.0
        %v2468 = vsel %vm2466, %v2389, 0.0
        %v2469 = vadd.f32 %v2467, %v2468
        %v2470 = vsel %vm2466, %v2392, 0.0
        %v2471 = vadd.f32 %v2469, %v2470
        %v2472 = vsel %vm2466, %v2394, 0.0
        %v2473 = vadd.f32 %v2471, %v2472
        %v2474 = vsel %vm2466, %v2397, 0.0
        %v2475 = vadd.f32 %v2473, %v2474
        %v2476 = vsel %vm2466, %v2399, 0.0
        %v2477 = vadd.f32 %v2475, %v2476
        %v2478 = vsel %vm2466, %v2402, 0.0
        %v2479 = vadd.f32 %v2477, %v2478
        %v2480 = vsel %vm2466, %v2404, 0.0
        %v2481 = vadd.f32 %v2479, %v2480
        %v2482 = vsel %vm2466, %v2407, 0.0
        %v2483 = vadd.f32 %v2481, %v2482
        %v2484 = vsel %vm2466, %v2409, 0.0
        %v2485 = vadd.f32 %v2483, %v2484
        %v2486 = vsel %vm2466, %v2412, 0.0
        %v2487 = vadd.f32 %v2485, %v2486
        %v2488 = vsel %vm2466, %v2414, 0.0
        %v2489 = vadd.f32 %v2487, %v2488
        %v2490 = vsel %vm2466, %v2417, 0.0
        %v2491 = vadd.f32 %v2489, %v2490
        %v2492 = vsel %vm2466, %v2419, 0.0
        %v2493 = vadd.f32 %v2491, %v2492
        %v2494 = vsel %vm2466, %v2422, 0.0
        %v2495 = vadd.f32 %v2493, %v2494
        %v2496 = vsel %vm2466, %v2424, 0.0
        %v2497 = vadd.f32 %v2495, %v2496
        %v2498 = vsel %vm2466, %v2427, 0.0
        %v2499 = vadd.f32 %v2497, %v2498
        %v2500 = vsel %vm2466, %v2429, 0.0
        %v2501 = vadd.f32 %v2499, %v2500
        %v2502 = vsel %vm2466, %v2432, 0.0
        %v2503 = vadd.f32 %v2501, %v2502
        %v2504 = vsel %vm2466, %v2434, 0.0
        %v2505 = vadd.f32 %v2503, %v2504
        %v2506 = vsel %vm2466, %v2437, 0.0
        %v2507 = vadd.f32 %v2505, %v2506
        %v2508 = vsel %vm2466, %v2439, 0.0
        %v2509 = vadd.f32 %v2507, %v2508
        %v2510 = vsel %vm2466, %v2442, 0.0
        %v2511 = vadd.f32 %v2509, %v2510
        %v2512 = vsel %vm2466, %v2444, 0.0
        %v2513 = vadd.f32 %v2511, %v2512
        %v2514 = vsel %vm2466, %v2447, 0.0
        %v2515 = vadd.f32 %v2513, %v2514
        %v2516 = vsel %vm2466, %v2449, 0.0
        %v2517 = vadd.f32 %v2515, %v2516
        %v2518 = vsel %vm2466, %v2452, 0.0
        %v2519 = vadd.f32 %v2517, %v2518
        %v2520 = vsel %vm2466, %v2454, 0.0
        %v2521 = vadd.f32 %v2519, %v2520
        %v2522 = vsel %vm2466, %v2457, 0.0
        %v2523 = vadd.f32 %v2521, %v2522
        %v2524 = vsel %vm2466, %v2459, 0.0
        %v2525 = vadd.f32 %v2523, %v2524
        %v2526 = vsel %vm2466, %v2462, 0.0
        %v2527 = vadd.f32 %v2525, %v2526
        %v2528 = vsel %vm2466, %v2464, 0.0
        %v2529 = vadd.f32 %v2527, %v2528
        %v2530 = vrot.slane %v2529, 4
        %v2531 = vadd.f32 %v2529, %v2530
        %v2532 = vrot.slane %v2531, 2
        %v2533 = vadd.f32 %v2531, %v2532
        %v2534 = vrot.slane %v2533, 1
        %v2535 = vadd.f32 %v2533, %v2534
        %vm2536 = vcmask 57344
        %2537 = vst.msk [vmem:[%s171] sm:$0x1] %vm2536, %v2535
        %v2538 = vmul.f32 %v2387, %v2387
        %v2539 = vmul.f32 %v2389, %v2389
        %v2540 = vmul.f32 %v2392, %v2392
        %v2541 = vmul.f32 %v2394, %v2394
        %v2542 = vmul.f32 %v2397, %v2397
        %v2543 = vmul.f32 %v2399, %v2399
        %v2544 = vmul.f32 %v2402, %v2402
        %v2545 = vmul.f32 %v2404, %v2404
        %v2546 = vmul.f32 %v2407, %v2407
        %v2547 = vmul.f32 %v2409, %v2409
        %v2548 = vmul.f32 %v2412, %v2412
        %v2549 = vmul.f32 %v2414, %v2414
        %v2550 = vmul.f32 %v2417, %v2417
        %v2551 = vmul.f32 %v2419, %v2419
        %v2552 = vmul.f32 %v2422, %v2422
        %v2553 = vmul.f32 %v2424, %v2424
        %v2554 = vmul.f32 %v2427, %v2427
        %v2555 = vmul.f32 %v2429, %v2429
        %v2556 = vmul.f32 %v2432, %v2432
        %v2557 = vmul.f32 %v2434, %v2434
        %v2558 = vmul.f32 %v2437, %v2437
        %v2559 = vmul.f32 %v2439, %v2439
        %v2560 = vmul.f32 %v2442, %v2442
        %v2561 = vmul.f32 %v2444, %v2444
        %v2562 = vmul.f32 %v2447, %v2447
        %v2563 = vmul.f32 %v2449, %v2449
        %v2564 = vmul.f32 %v2452, %v2452
        %v2565 = vmul.f32 %v2454, %v2454
        %v2566 = vmul.f32 %v2457, %v2457
        %v2567 = vmul.f32 %v2459, %v2459
        %v2568 = vmul.f32 %v2462, %v2462
        %v2569 = vmul.f32 %v2464, %v2464
        %v2570 = vsel %vm2466, %v2538, 0.0
        %v2571 = vsel %vm2466, %v2539, 0.0
        %v2572 = vadd.f32 %v2570, %v2571
        %v2573 = vsel %vm2466, %v2540, 0.0
        %v2574 = vadd.f32 %v2572, %v2573
        %v2575 = vsel %vm2466, %v2541, 0.0
        %v2576 = vadd.f32 %v2574, %v2575
        %v2577 = vsel %vm2466, %v2542, 0.0
        %v2578 = vadd.f32 %v2576, %v2577
        %v2579 = vsel %vm2466, %v2543, 0.0
        %v2580 = vadd.f32 %v2578, %v2579
        %v2581 = vsel %vm2466, %v2544, 0.0
        %v2582 = vadd.f32 %v2580, %v2581
        %v2583 = vsel %vm2466, %v2545, 0.0
        %v2584 = vadd.f32 %v2582, %v2583
        %v2585 = vsel %vm2466, %v2546, 0.0
        %v2586 = vadd.f32 %v2584, %v2585
        %v2587 = vsel %vm2466, %v2547, 0.0
        %v2588 = vadd.f32 %v2586, %v2587
        %v2589 = vsel %vm2466, %v2548, 0.0
        %v2590 = vadd.f32 %v2588, %v2589
        %v2591 = vsel %vm2466, %v2549, 0.0
        %v2592 = vadd.f32 %v2590, %v2591
        %v2593 = vsel %vm2466, %v2550, 0.0
        %v2594 = vadd.f32 %v2592, %v2593
        %v2595 = vsel %vm2466, %v2551, 0.0
        %v2596 = vadd.f32 %v2594, %v2595
        %v2597 = vsel %vm2466, %v2552, 0.0
        %v2598 = vadd.f32 %v2596, %v2597
        %v2599 = vsel %vm2466, %v2553, 0.0
        %v2600 = vadd.f32 %v2598, %v2599
        %v2601 = vsel %vm2466, %v2554, 0.0
        %v2602 = vadd.f32 %v2600, %v2601
        %v2603 = vsel %vm2466, %v2555, 0.0
        %v2604 = vadd.f32 %v2602, %v2603
        %v2605 = vsel %vm2466, %v2556, 0.0
        %v2606 = vadd.f32 %v2604, %v2605
        %v2607 = vsel %vm2466, %v2557, 0.0
        %v2608 = vadd.f32 %v2606, %v2607
        %v2609 = vsel %vm2466, %v2558, 0.0
        %v2610 = vadd.f32 %v2608, %v2609
        %v2611 = vsel %vm2466, %v2559, 0.0
        %v2612 = vadd.f32 %v2610, %v2611
        %v2613 = vsel %vm2466, %v2560, 0.0
        %v2614 = vadd.f32 %v2612, %v2613
        %v2615 = vsel %vm2466, %v2561, 0.0
        %v2616 = vadd.f32 %v2614, %v2615
        %v2617 = vsel %vm2466, %v2562, 0.0
        %v2618 = vadd.f32 %v2616, %v2617
        %v2619 = vsel %vm2466, %v2563, 0.0
        %v2620 = vadd.f32 %v2618, %v2619
        %v2621 = vsel %vm2466, %v2564, 0.0
        %v2622 = vadd.f32 %v2620, %v2621
        %v2623 = vsel %vm2466, %v2565, 0.0
        %v2624 = vadd.f32 %v2622, %v2623
        %v2625 = vsel %vm2466, %v2566, 0.0
        %v2626 = vadd.f32 %v2624, %v2625
        %v2627 = vsel %vm2466, %v2567, 0.0
        %v2628 = vadd.f32 %v2626, %v2627
        %v2629 = vsel %vm2466, %v2568, 0.0
        %v2630 = vadd.f32 %v2628, %v2629
        %v2631 = vsel %vm2466, %v2569, 0.0
        %v2632 = vadd.f32 %v2630, %v2631
        %v2633 = vrot.slane %v2632, 4
        %v2634 = vadd.f32 %v2632, %v2633
        %v2635 = vrot.slane %v2634, 2
        %v2636 = vadd.f32 %v2634, %v2635
        %v2637 = vrot.slane %v2636, 1
        %v2638 = vadd.f32 %v2636, %v2637
        %2639 = vst.msk [vmem:[%s171 + $0x1] sm:$0x1] %vm2536, %v2638
        %2640 = vst.msk [vmem:[%s181] sm:$0xff] %vm2466, %v2387
        %2641 = vst.msk [vmem:[%s181 + $0x8] sm:$0xff] %vm2466, %v2389
        %2642 = vst.msk [vmem:[%s181 + $0x10] sm:$0xff] %vm2466, %v2392
        %2643 = vst.msk [vmem:[%s181 + $0x18] sm:$0xff] %vm2466, %v2394
        %2644 = vst.msk [vmem:[%s181 + $0x20] sm:$0xff] %vm2466, %v2397
        %2645 = vst.msk [vmem:[%s181 + $0x28] sm:$0xff] %vm2466, %v2399
        %2646 = vst.msk [vmem:[%s181 + $0x30] sm:$0xff] %vm2466, %v2402
        %2647 = vst.msk [vmem:[%s181 + $0x38] sm:$0xff] %vm2466, %v2404
        %2648 = vst.msk [vmem:[%s181 + $0x40] sm:$0xff] %vm2466, %v2407
        %2649 = vst.msk [vmem:[%s181 + $0x48] sm:$0xff] %vm2466, %v2409
        %2650 = vst.msk [vmem:[%s181 + $0x50] sm:$0xff] %vm2466, %v2412
        %2651 = vst.msk [vmem:[%s181 + $0x58] sm:$0xff] %vm2466, %v2414
        %2652 = vst.msk [vmem:[%s181 + $0x60] sm:$0xff] %vm2466, %v2417
        %2653 = vst.msk [vmem:[%s181 + $0x68] sm:$0xff] %vm2466, %v2419
        %2654 = vst.msk [vmem:[%s181 + $0x70] sm:$0xff] %vm2466, %v2422
        %2655 = vst.msk [vmem:[%s181 + $0x78] sm:$0xff] %vm2466, %v2424
        %2656 = vst.msk [vmem:[%s181 + $0x80] sm:$0xff] %vm2466, %v2427
        %2657 = vst.msk [vmem:[%s181 + $0x88] sm:$0xff] %vm2466, %v2429
        %2658 = vst.msk [vmem:[%s181 + $0x90] sm:$0xff] %vm2466, %v2432
        %2659 = vst.msk [vmem:[%s181 + $0x98] sm:$0xff] %vm2466, %v2434
        %2660 = vst.msk [vmem:[%s181 + $0xa0] sm:$0xff] %vm2466, %v2437
        %2661 = vst.msk [vmem:[%s181 + $0xa8] sm:$0xff] %vm2466, %v2439
        %2662 = vst.msk [vmem:[%s181 + $0xb0] sm:$0xff] %vm2466, %v2442
        %2663 = vst.msk [vmem:[%s181 + $0xb8] sm:$0xff] %vm2466, %v2444
        %2664 = vst.msk [vmem:[%s181 + $0xc0] sm:$0xff] %vm2466, %v2447
        %2665 = vst.msk [vmem:[%s181 + $0xc8] sm:$0xff] %vm2466, %v2449
        %2666 = vst.msk [vmem:[%s181 + $0xd0] sm:$0xff] %vm2466, %v2452
        %2667 = vst.msk [vmem:[%s181 + $0xd8] sm:$0xff] %vm2466, %v2454
        %2668 = vst.msk [vmem:[%s181 + $0xe0] sm:$0xff] %vm2466, %v2457
        %2669 = vst.msk [vmem:[%s181 + $0xe8] sm:$0xff] %vm2466, %v2459
        %2670 = vst.msk [vmem:[%s181 + $0xf0] sm:$0xff] %vm2466, %v2462
        %2671 = vst.msk [vmem:[%s181 + $0xf8] sm:$0xff] %vm2466, %v2464
        %p2672 = scmp.lt.s32.totalorder %s18, 1
        %s2673 = scalar_select %p2672, %s18, 1
        %s2674 = smul.addr %s2673, 32
        %s2675 = smul.addr %s2674, 8
        %s2676 = scalar_lea.vmem %s2, %s2675
        %s2677 = sand.u32 %s99, 1
        %s2678 = scalar_lea.sflag [#allocation5], %s2677
        %s2679 = sand.u32 %s99, 1
        %s2680 = smul.addr %s2679, 2
        %s2681 = scalar_lea.vmem [#allocation4], %s2680
        // Predicated region
        $region29: #{tpu_custom_call.1} parent=27 // pred_check
          %p2682 = pneg %p83
        $region30: #{tpu_custom_call.1} parent=27 // pred_check_branch
          %2684 = sbr.rel (%p2682) target = $region32
        $region31: #{tpu_custom_call.1} parent=27 // pred_region
          _
        $region32: #{tpu_custom_call.1} parent=27 // pred_fallthru
          _
        // Predicated region
        $region33: #{tpu_custom_call.1} parent=27 // pred_check
          %p2685 = pneg %p109
        $region34: #{tpu_custom_call.1} parent=27 // pred_check_branch
          %2687 = sbr.rel (%p2685) target = $region36
        $region35: #{tpu_custom_call.1} parent=27 // pred_region
          %2689 = vsyncadd %s2678, 0
          %s2690 = smul.addr %s18, 2
          %s2691 = scalar_lea.hbm %s3, %s2690
          %s2693 = sshll.u32 %s2681, 4
          %s2694 = int_to_ptr.vmem [resolvable:$true] %s2693
          %s2695 = sshll.u32 %s2691, 4
          %s2696 = int_to_ptr.hbm [resolvable:$true] %s2695
          %2698 = dma.vmem_to_hbm [thread:$0]  %s2694, 32, %s2696, %s2678
        $region36: #{tpu_custom_call.1} parent=27 // pred_fallthru
          _
      $region28: #{tpu_custom_call.1} parent=5 // pred_fallthru
        _
      %p2699 = scmp.le.s32.totalorder 2, %s13
      // Predicated region
      $region37: #{tpu_custom_call.1} parent=5 // pred_check
        %p2700 = pneg %p2699
      $region38: #{tpu_custom_call.1} parent=5 // pred_check_branch
        %2702 = sbr.rel (%p2700) target = $region40
      $region39: #{tpu_custom_call.1} parent=5 // pred_region
        %s2703 = ssub.s32 %s13, 2
        // Predicated region
        $region41: #{tpu_custom_call.1} parent=39 // pred_check
          %p2704 = pneg %p89
        $region42: #{tpu_custom_call.1} parent=39 // pred_check_branch
          %2706 = sbr.rel (%p2704) target = $region44
        $region43: #{tpu_custom_call.1} parent=39 // pred_region
          %p2707 = scmp.lt.s32.totalorder %s19, 1
          %s2708 = scalar_select %p2707, %s19, 1
          %s2709 = smul.addr %s2708, 32
          %s2710 = smul.addr %s2709, 8
          %s2711 = scalar_lea.vmem %s2, %s2710
        $region44: #{tpu_custom_call.1} parent=39 // pred_fallthru
          _
        // Predicated region
        $region45: #{tpu_custom_call.1} parent=39 // pred_check
          %p2712 = pneg %p115
        $region46: #{tpu_custom_call.1} parent=39 // pred_check_branch
          %2714 = sbr.rel (%p2712) target = $region48
        $region47: #{tpu_custom_call.1} parent=39 // pred_region
          %s2715 = sand.u32 %s100, 1
          %s2716 = scalar_lea.sflag [#allocation5], %s2715
          %s2717 = sand.u32 %s100, 1
          %s2718 = smul.addr %s2717, 2
          %s2719 = scalar_lea.vmem [#allocation4], %s2718
          %2721 = dma.done %s2716, 32
        $region48: #{tpu_custom_call.1} parent=39 // pred_fallthru
          _
      $region40: #{tpu_custom_call.1} parent=5 // pred_fallthru
        _
    $region6: #{tpu_custom_call.1} parent=1 // loop_footer
      %s17 = sadd.s32 1, %s13
    $region7: #{tpu_custom_call.1} parent=1 // loop_footer_branch
      %12 = sbr.rel target = $region3
    $region8: #{tpu_custom_call.1} parent=1 // loop_exit
      _
    %2722 = vsyncpa [#allocation5], 1
    %s2723 = scalar_lea.sflag [#allocation5], 1
    %2724 = vsyncpa %s2723, 1

</llo_original>
